<compile_context>
chip_gen: v6e
topology: v6e:2x2x1
jax: 0.10.0
libtpu: 0.0.40
codegen_flags: <defaults>
</compile_context>

<pallas_src>
import functools

import jax
import jax.numpy as jnp
from jax import lax
from jax.experimental import pallas as pl
from jax.experimental.pallas import tpu as pltpu

_MIB = 1024 * 1024


def _vmem_limit(resident_bytes):
    # 2x for double-buffered blocks + generous headroom; floor above the
    # default scoped limit, cap below physical VMEM.
    return int(min(100 * _MIB, max(32 * _MIB, 2 * resident_bytes + 4 * _MIB)))


# ----------------------------------------------------------------------------
# Kernel 1: row-tiled linear  y = x @ W + b.
# Used for the self-attention fast path with W = [W_q | W_k | W_v]
# (d_model, 3*d_model): one wide matmul, one lane-dense (tm, 3*d_model) store.
# ----------------------------------------------------------------------------
def _linear_kernel(x_ref, w_ref, b_ref, o_ref):
    y = jnp.dot(x_ref[...], w_ref[...], preferred_element_type=jnp.float32)
    o_ref[...] = (y + b_ref[...]).astype(o_ref.dtype)


def linear(x, w, b, *, tm=512):
    """x: (N, d_in), w: (d_in, d_out), b: (1, d_out) -> (N, d_out)."""
    n, d_in = x.shape
    d_out = w.shape[1]
    tm = min(tm, n)
    itemsize = jnp.dtype(x.dtype).itemsize
    resident = (tm * d_in + tm * d_out + d_in * d_out + d_out) * itemsize
    return pl.pallas_call(
        _linear_kernel,
        out_shape=jax.ShapeDtypeStruct((n, d_out), x.dtype),
        grid=(pl.cdiv(n, tm),),
        in_specs=[
            pl.BlockSpec((tm, d_in), lambda i: (i, 0)),
            pl.BlockSpec((d_in, d_out), lambda i: (0, 0)),   # resident weights
            pl.BlockSpec((1, d_out), lambda i: (0, 0)),      # resident bias
        ],
        out_specs=pl.BlockSpec((tm, d_out), lambda i: (i, 0)),
        compiler_params=pltpu.CompilerParams(
            dimension_semantics=("parallel",),
            vmem_limit_bytes=_vmem_limit(resident)),
    )(x, w, b)


# ----------------------------------------------------------------------------
# Kernel 2: general (cross-attention) Q/K/V projection.
# Three row tiles are pipelined; stacked weights (3, d, d) / biases stay
# resident.  Output is one packed (tm, 3*d_model) tile ([Q | K | V] columns),
# written with three 128-aligned full-d_model-wide stores.
# ----------------------------------------------------------------------------
def _qkv_kernel(xq_ref, xk_ref, xv_ref, w_ref, b_ref, o_ref, *, d_model):
    for i, x_ref in enumerate((xq_ref, xk_ref, xv_ref)):
        y = jnp.dot(x_ref[...], w_ref[i], preferred_element_type=jnp.float32)
        lo = i * d_model
        o_ref[:, lo:lo + d_model] = (y + b_ref[i]).astype(o_ref.dtype)


def qkv_projection(xq, xk, xv, w_stack, b_stack, *, tm=512):
    """xq/xk/xv: (N, d); w_stack: (3, d, d); b_stack: (3, 1, d) -> (N, 3*d)."""
    n, d_model = xq.shape
    tm = min(tm, n)
    itemsize = jnp.dtype(xq.dtype).itemsize
    resident = (6 * tm * d_model + 3 * d_model * d_model + 3 * d_model) * itemsize
    row_spec = pl.BlockSpec((tm, d_model), lambda i: (i, 0))
    return pl.pallas_call(
        functools.partial(_qkv_kernel, d_model=d_model),
        out_shape=jax.ShapeDtypeStruct((n, 3 * d_model), xq.dtype),
        grid=(pl.cdiv(n, tm),),
        in_specs=[
            row_spec, row_spec, row_spec,
            pl.BlockSpec((3, d_model, d_model), lambda i: (0, 0, 0)),  # resident
            pl.BlockSpec((3, 1, d_model), lambda i: (0, 0, 0)),        # resident
        ],
        out_specs=pl.BlockSpec((tm, 3 * d_model), lambda i: (i, 0)),
        compiler_params=pltpu.CompilerParams(
            dimension_semantics=("parallel",),
            vmem_limit_bytes=_vmem_limit(resident)),
    )(xq, xk, xv, w_stack, b_stack)


# ----------------------------------------------------------------------------
# Kernel 3: multi-head attention + fused output projection.
# Grid = (batch, S // TQ).  Blocks: Q tile (TQ, d_model), full-seq K / V
# (S, d_model) per batch (column-offset views of the packed QKV array),
# W_concat (d_model, d_model) + bias resident.  Heads are static lane slices;
# normalized per-head contexts land in a VMEM scratch so the output projection
# runs as one full-K matmul and the only HBM store is one full-width tile.
# ----------------------------------------------------------------------------
def _attn_outproj_kernel(q_ref, k_ref, v_ref, wo_ref, bo_ref, o_ref, ctx_ref, *,
                         num_heads, d_head, scale):
    for h in range(num_heads):
        lo = h * d_head
        hi = lo + d_head
        qh = q_ref[:, lo:hi] * scale           # fold 1/sqrt(d_head) into small q tile
        kh = k_ref[:, lo:hi]
        vh = v_ref[:, lo:hi]
        # QK^T without an XLU transpose: contract last dims of both operands.
        s = lax.dot_general(qh, kh, (((1,), (1,)), ((), ())),
                            preferred_element_type=jnp.float32)        # (TQ, S)
        m = jnp.max(s, axis=-1, keepdims=True)
        p = jnp.exp(s - m)
        l = jnp.sum(p, axis=-1, keepdims=True)
        # TODO(synk): fold the l reduction into the PV matmul (ones column).
        o_h = jnp.dot(p.astype(vh.dtype), vh,
                      preferred_element_type=jnp.float32)               # (TQ, dh)
        ctx_ref[:, lo:hi] = (o_h * pl.reciprocal(l, approx=True)).astype(ctx_ref.dtype)

    # Fused output projection: one K = d_model matmul + bias, full-width store.
    y = jnp.dot(ctx_ref[...], wo_ref[...], preferred_element_type=jnp.float32)
    o_ref[...] = (y + bo_ref[...]).astype(o_ref.dtype)


def attention_with_output_projection(qkv, w_o, b_o, num_heads, *, tq=256):
    """qkv: (B, S, 3*d_model) packed [Q|K|V] -> (B, S, d_model). mask=None path."""
    b, s, d3 = qkv.shape
    d_model = d3 // 3
    d_head = d_model // num_heads
    scale = 1.0 / (float(d_head) ** 0.5)
    tq = min(tq, s)
    itemsize = jnp.dtype(qkv.dtype).itemsize
    resident = ((2 * tq * d_model)               # q tile + out tile
                + 2 * s * d_model                # resident full-seq K and V
                + d_model * d_model + d_model    # W_o + b_o
                + tq * d_model) * itemsize       # ctx scratch
    resident += 3 * tq * s * 4                   # f32 score/prob working set
    kernel = functools.partial(_attn_outproj_kernel, num_heads=num_heads,
                               d_head=d_head, scale=scale)
    return pl.pallas_call(
        kernel,
        out_shape=jax.ShapeDtypeStruct((b, s, d_model), qkv.dtype),
        grid=(b, pl.cdiv(s, tq)),
        in_specs=[
            pl.BlockSpec((None, tq, d_model), lambda bi, qi: (bi, qi, 0)),  # Q tile
            pl.BlockSpec((None, s, d_model), lambda bi, qi: (bi, 0, 1)),    # K (full seq)
            pl.BlockSpec((None, s, d_model), lambda bi, qi: (bi, 0, 2)),    # V (full seq)
            pl.BlockSpec((d_model, d_model), lambda bi, qi: (0, 0)),        # W_o resident
            pl.BlockSpec((1, d_model), lambda bi, qi: (0, 0)),              # b_o resident
        ],
        out_specs=pl.BlockSpec((None, tq, d_model), lambda bi, qi: (bi, qi, 0)),
        scratch_shapes=[pltpu.VMEM((tq, d_model), qkv.dtype)],
        compiler_params=pltpu.CompilerParams(
            dimension_semantics=("parallel", "parallel"),
            vmem_limit_bytes=_vmem_limit(resident)),
    )(qkv, qkv, qkv, w_o, b_o)


# ----------------------------------------------------------------------------
# Parameter packing (one-time setup, hoisted out of the per-forward path) and
# the MultiHeadAttention forward glue.  Weights are stored (d_in, d_out),
# i.e. the transpose of nn.Linear.weight, so everything is x @ W + b.
# ----------------------------------------------------------------------------
def prepare_mha_params(params):
    w_q, w_k, w_v = params["w_q"], params["w_k"], params["w_v"]
    b_q, b_k, b_v = params["b_q"], params["b_k"], params["b_v"]
    return {
        # Self-attention fast path: one (d_model, 3*d_model) matmul.
        "w_qkv_cat": jnp.concatenate([w_q, w_k, w_v], axis=1),
        "b_qkv_cat": jnp.concatenate([b_q, b_k, b_v], axis=1),
        # General (cross-attention) path: stacked weights held resident.
        "w_qkv_stack": jnp.stack([w_q, w_k, w_v], axis=0),
        "b_qkv_stack": jnp.stack([b_q, b_k, b_v], axis=0),
        "w_concat": params["w_concat"],
        "b_concat": params["b_concat"],
    }


def multi_head_attention(q, k, v, prepared, num_heads, *, tm=512, tq=256):
    """q/k/v: (B, S, d_model) -> (B, S, d_model).  mask=None path only."""
    assert q.shape == k.shape == v.shape  # TODO(synk): differing KV length
    b, s, d_model = q.shape
    n = b * s
    if (q is k) and (k is v):
        # Self-attention fast path: single wide matmul, 3x less input DMA.
        qkv = linear(q.reshape(n, d_model),
                     prepared["w_qkv_cat"], prepared["b_qkv_cat"], tm=tm)
    else:
        qkv = qkv_projection(q.reshape(n, d_model), k.reshape(n, d_model),
                             v.reshape(n, d_model),
                             prepared["w_qkv_stack"], prepared["b_qkv_stack"],
                             tm=tm)
    return attention_with_output_projection(
        qkv.reshape(b, s, 3 * d_model),
        prepared["w_concat"], prepared["b_concat"], num_heads, tq=tq)


# ----------------------------------------------------------------------------
# Pure-JAX reference (mirrors the PyTorch module) for a sanity check.
# ----------------------------------------------------------------------------
def reference_mha(q, k, v, params, num_heads):
    b, s, d_model = q.shape
    d_head = d_model // num_heads

    def lin(x, w, bias):
        return x @ w + bias

    def split_heads(x):
        return x.reshape(b, s, num_heads, d_head).transpose(0, 2, 1, 3)

    qh = split_heads(lin(q, params["w_q"], params["b_q"]))
    kh = split_heads(lin(k, params["w_k"], params["b_k"]))
    vh = split_heads(lin(v, params["w_v"], params["b_v"]))
    scores = jnp.einsum("bhqd,bhkd->bhqk", qh, kh) / (d_head ** 0.5)
    p = jax.nn.softmax(scores, axis=-1)
    out = jnp.einsum("bhqk,bhkd->bhqd", p, vh)
    out = out.transpose(0, 2, 1, 3).reshape(b, s, d_model)
    return lin(out, params["w_concat"], params["b_concat"])


if __name__ == "__main__":
    # Small shapes consistent with the module: d_model divisible by num_heads.
    batch, seq, d_model, num_heads = 2, 256, 128, 8

    key = jax.random.PRNGKey(0)
    keys = jax.random.split(key, 12)

    def init_w(k_):
        return (0.02 * jax.random.normal(k_, (d_model, d_model))).astype(jnp.float32)

    def init_b(k_):
        return (0.01 * jax.random.normal(k_, (1, d_model))).astype(jnp.float32)

    params = {
        "w_q": init_w(keys[0]), "b_q": init_b(keys[1]),
        "w_k": init_w(keys[2]), "b_k": init_b(keys[3]),
        "w_v": init_w(keys[4]), "b_v": init_b(keys[5]),
        "w_concat": init_w(keys[6]), "b_concat": init_b(keys[7]),
    }
    prepared = prepare_mha_params(params)   # one-time weight packing

    q = jax.random.normal(keys[8], (batch, seq, d_model), dtype=jnp.float32)
    k = jax.random.normal(keys[9], (batch, seq, d_model), dtype=jnp.float32)
    v = jax.random.normal(keys[10], (batch, seq, d_model), dtype=jnp.float32)

    # General (cross-attention) path: distinct q, k, v.
    out = jax.block_until_ready(multi_head_attention(q, k, v, prepared, num_heads))
    ref = reference_mha(q, k, v, params, num_heads)
    assert out.shape == (batch, seq, d_model)
    err = float(jnp.max(jnp.abs(out - ref)))
    assert jnp.allclose(out, ref, rtol=5e-3, atol=5e-3), err

    # Self-attention fast path: q is k is v.
    x = jax.random.normal(keys[11], (batch, seq, d_model), dtype=jnp.float32)
    out_sa = jax.block_until_ready(multi_head_attention(x, x, x, prepared, num_heads))
    ref_sa = reference_mha(x, x, x, params, num_heads)
    err_sa = float(jnp.max(jnp.abs(out_sa - ref_sa)))
    assert jnp.allclose(out_sa, ref_sa, rtol=5e-3, atol=5e-3), err_sa

    print("KERNEL_OK")
</pallas_src>

<mosaic_0001>
module attributes {stable_mosaic.version = 11 : i64} {
  func.func @_qkv_kernel(%arg0: i32, %arg1: memref<512x128xf32, #tpu.memory_space<vmem>>, %arg2: memref<512x128xf32, #tpu.memory_space<vmem>>, %arg3: memref<512x128xf32, #tpu.memory_space<vmem>>, %arg4: memref<3x128x128xf32, #tpu.memory_space<vmem>>, %arg5: memref<3x1x128xf32, #tpu.memory_space<vmem>>, %arg6: memref<512x384xf32, #tpu.memory_space<vmem>>) attributes {dimension_semantics = [#tpu.dimension_semantics<parallel>], iteration_bounds = array<i64: 1>, scalar_prefetch = 0 : i64, scratch_operands = 0 : i64, tpu.core_type = #tpu.core_type<tc>, window_params = [{transform_indices = @transform_0, window_bounds = array<i64: 512, 128>}, {transform_indices = @transform_1, window_bounds = array<i64: 512, 128>}, {transform_indices = @transform_2, window_bounds = array<i64: 512, 128>}, {pipeline_mode = #tpu.pipeline_mode<synchronous>, transform_indices = @transform_3, window_bounds = array<i64: 3, 128, 128>}, {pipeline_mode = #tpu.pipeline_mode<synchronous>, transform_indices = @transform_4, window_bounds = array<i64: 3, 1, 128>}, {transform_indices = @transform_5, window_bounds = array<i64: 512, 384>}]} {
    %c0 = arith.constant 0 : index
    %c0_0 = arith.constant 0 : index
    %0 = vector.load %arg1[%c0, %c0_0] : memref<512x128xf32, #tpu.memory_space<vmem>>, vector<512x128xf32>
    %c0_1 = arith.constant 0 : index
    %c0_2 = arith.constant 0 : index
    %c0_3 = arith.constant 0 : index
    %1 = vector.load %arg4[%c0_1, %c0_2, %c0_3] : memref<3x128x128xf32, #tpu.memory_space<vmem>>, vector<1x128x128xf32>
    %2 = vector.shape_cast %1 : vector<1x128x128xf32> to vector<128x128xf32>
    %cst = arith.constant dense<0.000000e+00> : vector<512x128xf32>
    %3 = tpu.matmul %0, %2, %cst {dimension_numbers = #tpu.dot_dimension_numbers<[1], [0], [0], [1], [0, 0, 1, 1], [], []>} : vector<512x128xf32>, vector<128x128xf32>, vector<512x128xf32> -> vector<512x128xf32>
    %c0_4 = arith.constant 0 : index
    %c0_5 = arith.constant 0 : index
    %c0_6 = arith.constant 0 : index
    %4 = vector.load %arg5[%c0_4, %c0_5, %c0_6] : memref<3x1x128xf32, #tpu.memory_space<vmem>>, vector<1x1x128xf32>
    %5 = vector.shape_cast %4 : vector<1x1x128xf32> to vector<1x128xf32>
    %6 = vector.broadcast %5 : vector<1x128xf32> to vector<512x128xf32>
    %7 = arith.addf %3, %6 : vector<512x128xf32>
    %c0_7 = arith.constant 0 : index
    %c0_8 = arith.constant 0 : index
    %8 = vector.load %arg6[%c0_7, %c0_8] : memref<512x384xf32, #tpu.memory_space<vmem>>, vector<512x128xf32>
    tpu.vector_store %arg6[%c0_7, %c0_8], %7 {strides = array<i32>} : memref<512x384xf32, #tpu.memory_space<vmem>>, vector<512x128xf32>,
    %c0_9 = arith.constant 0 : index
    %c0_10 = arith.constant 0 : index
    %9 = vector.load %arg2[%c0_9, %c0_10] : memref<512x128xf32, #tpu.memory_space<vmem>>, vector<512x128xf32>
    %c1 = arith.constant 1 : index
    %c0_11 = arith.constant 0 : index
    %c0_12 = arith.constant 0 : index
    %10 = vector.load %arg4[%c1, %c0_11, %c0_12] : memref<3x128x128xf32, #tpu.memory_space<vmem>>, vector<1x128x128xf32>
    %11 = vector.shape_cast %10 : vector<1x128x128xf32> to vector<128x128xf32>
    %cst_13 = arith.constant dense<0.000000e+00> : vector<512x128xf32>
    %12 = tpu.matmul %9, %11, %cst_13 {dimension_numbers = #tpu.dot_dimension_numbers<[1], [0], [0], [1], [0, 0, 1, 1], [], []>} : vector<512x128xf32>, vector<128x128xf32>, vector<512x128xf32> -> vector<512x128xf32>
    %c1_14 = arith.constant 1 : index
    %c0_15 = arith.constant 0 : index
    %c0_16 = arith.constant 0 : index
    %13 = vector.load %arg5[%c1_14, %c0_15, %c0_16] : memref<3x1x128xf32, #tpu.memory_space<vmem>>, vector<1x1x128xf32>
    %14 = vector.shape_cast %13 : vector<1x1x128xf32> to vector<1x128xf32>
    %15 = vector.broadcast %14 : vector<1x128xf32> to vector<512x128xf32>
    %16 = arith.addf %12, %15 : vector<512x128xf32>
    %c0_17 = arith.constant 0 : index
    %c128 = arith.constant 128 : index
    %17 = vector.load %arg6[%c0_17, %c128] : memref<512x384xf32, #tpu.memory_space<vmem>>, vector<512x128xf32>
    tpu.vector_store %arg6[%c0_17, %c128], %16 {strides = array<i32>} : memref<512x384xf32, #tpu.memory_space<vmem>>, vector<512x128xf32>,
    %c0_18 = arith.constant 0 : index
    %c0_19 = arith.constant 0 : index
    %18 = vector.load %arg3[%c0_18, %c0_19] : memref<512x128xf32, #tpu.memory_space<vmem>>, vector<512x128xf32>
    %c2 = arith.constant 2 : index
    %c0_20 = arith.constant 0 : index
    %c0_21 = arith.constant 0 : index
    %19 = vector.load %arg4[%c2, %c0_20, %c0_21] : memref<3x128x128xf32, #tpu.memory_space<vmem>>, vector<1x128x128xf32>
    %20 = vector.shape_cast %19 : vector<1x128x128xf32> to vector<128x128xf32>
    %cst_22 = arith.constant dense<0.000000e+00> : vector<512x128xf32>
    %21 = tpu.matmul %18, %20, %cst_22 {dimension_numbers = #tpu.dot_dimension_numbers<[1], [0], [0], [1], [0, 0, 1, 1], [], []>} : vector<512x128xf32>, vector<128x128xf32>, vector<512x128xf32> -> vector<512x128xf32>
    %c2_23 = arith.constant 2 : index
    %c0_24 = arith.constant 0 : index
    %c0_25 = arith.constant 0 : index
    %22 = vector.load %arg5[%c2_23, %c0_24, %c0_25] : memref<3x1x128xf32, #tpu.memory_space<vmem>>, vector<1x1x128xf32>
    %23 = vector.shape_cast %22 : vector<1x1x128xf32> to vector<1x128xf32>
    %24 = vector.broadcast %23 : vector<1x128xf32> to vector<512x128xf32>
    %25 = arith.addf %21, %24 : vector<512x128xf32>
    %c0_26 = arith.constant 0 : index
    %c256 = arith.constant 256 : index
    %26 = vector.load %arg6[%c0_26, %c256] : memref<512x384xf32, #tpu.memory_space<vmem>>, vector<512x128xf32>
    tpu.vector_store %arg6[%c0_26, %c256], %25 {strides = array<i32>} : memref<512x384xf32, #tpu.memory_space<vmem>>, vector<512x128xf32>,
    return
  }
  func.func @transform_0(%arg0: i32) -> (i32, i32) {
    %c0_i32 = arith.constant 0 : i32
    %c0_i32_0 = arith.constant 0 : i32
    return %arg0, %c0_i32 : i32, i32
  }
  func.func @transform_1(%arg0: i32) -> (i32, i32) {
    %c0_i32 = arith.constant 0 : i32
    %c0_i32_0 = arith.constant 0 : i32
    return %arg0, %c0_i32 : i32, i32
  }
  func.func @transform_2(%arg0: i32) -> (i32, i32) {
    %c0_i32 = arith.constant 0 : i32
    %c0_i32_0 = arith.constant 0 : i32
    return %arg0, %c0_i32 : i32, i32
  }
  func.func @transform_3(%arg0: i32) -> (i32, i32, i32) {
    %c0_i32 = arith.constant 0 : i32
    %c0_i32_0 = arith.constant 0 : i32
    %c0_i32_1 = arith.constant 0 : i32
    %c0_i32_2 = arith.constant 0 : i32
    return %c0_i32, %c0_i32_0, %c0_i32_1 : i32, i32, i32
  }
  func.func @transform_4(%arg0: i32) -> (i32, i32, i32) {
    %c0_i32 = arith.constant 0 : i32
    %c0_i32_0 = arith.constant 0 : i32
    %c0_i32_1 = arith.constant 0 : i32
    %c0_i32_2 = arith.constant 0 : i32
    return %c0_i32, %c0_i32_0, %c0_i32_1 : i32, i32, i32
  }
  func.func @transform_5(%arg0: i32) -> (i32, i32) {
    %c0_i32 = arith.constant 0 : i32
    %c0_i32_0 = arith.constant 0 : i32
    return %arg0, %c0_i32 : i32, i32
  }
}

</mosaic_0001>

<llo_original>
// kernel: tpu_custom_call.1
$region0: #{tpu_custom_call.1}
  #allocation0 [shape = 'u32[]', space=smem, size = 0x4, offset = 0x4, fixed_abs, tag = 'smem constant byte address 0x4 - core index']
  #allocation1 [shape = 'u32[144,128]{1,0:T(1,128)}', space=vmem, size = 0x12000, scoped, tag = 'internal scratch']
  %s0 = inlined_call_operand.hbm [shape: f32[512,128], index: 0, kind: input, shape index: {}]
  %s1 = inlined_call_operand.hbm [shape: f32[512,128], index: 1, kind: input, shape index: {}]
  %s2 = inlined_call_operand.hbm [shape: f32[512,128], index: 2, kind: input, shape index: {}]
  %s3 = inlined_call_operand.hbm [shape: f32[3,128,128], index: 3, kind: input, shape index: {}]
  %s4 = inlined_call_operand.vmem [shape: f32[3,1,128], index: 4, kind: input, shape index: {}]
  %s5 = inlined_call_operand.hbm [shape: f32[512,384], index: 5, kind: output, shape index: {}]
  %s6 = sld [smem:[#allocation0]]
  $region46: #{tpu_custom_call.1} parent=0
    _
  %s8 = ssub.s32 1, %s6
  %s9 = scalar_select 0, %s8, %s6
  $region1: #{tpu_custom_call.1} parent=0
    #allocation2 [shape = 'u8[262144]{0}', space=vmem, size = 0x40000, scoped, tag = 'input window, operand 0, single buffered']
    #allocation3 [shape = 's32[1]{0}', space=sflag, size = 0x4, scoped, tag = 'scoped memory for tpu_custom_call.1']
    #allocation4 [shape = 's32[1]{0}', space=sflag, size = 0x4, scoped, tag = 'scoped memory for tpu_custom_call.1']
    #allocation5 [shape = 'u8[262144]{0}', space=vmem, size = 0x40000, scoped, tag = 'input window, operand 1, single buffered']
    #allocation6 [shape = 's32[1]{0}', space=sflag, size = 0x4, scoped, tag = 'scoped memory for tpu_custom_call.1']
    #allocation7 [shape = 'u8[262144]{0}', space=vmem, size = 0x40000, scoped, tag = 'input window, operand 2, single buffered']
    #allocation8 [shape = 'u8[196608]{0}', space=vmem, size = 0x30000, scoped, tag = 'input window, operand 3, single buffered']
    #allocation9 [shape = 's32[1]{0}', space=sflag, size = 0x4, scoped, tag = 'scoped memory for tpu_custom_call.1']
    #allocation10 [shape = 'u8[786432]{0}', space=vmem, size = 0xc0000, scoped, tag = 'output window, operand 0, single buffered']
    %10 = vsyncpa [#allocation3], 0
    %11 = vsyncpa [#allocation6], 0
    %12 = vsyncpa [#allocation9], 0
    %13 = vsyncpa [#allocation4], 0
    // Predicated region
    $region2: #{tpu_custom_call.1} parent=1 // pred_check
      _
    $region3: #{tpu_custom_call.1} parent=1 // pred_check_branch
      %15 = sbr.rel (0) target = $region5
    $region4: #{tpu_custom_call.1} parent=1 // pred_region
      %s17 = ssub.s32 8192, 8192
      %18 = vsyncadd [#allocation3], %s17
      %s19 = sshll.u32 [#allocation2], 4
      %s20 = int_to_ptr.vmem [resolvable:$true] %s19
      %25 = dma.hbm_to_vmem [thread:$0]  %s0, 8192, %s20, [#allocation3], 128, 128, 8
    $region5: #{tpu_custom_call.1} parent=1 // pred_fallthru
      _
    // Predicated region
    $region6: #{tpu_custom_call.1} parent=1 // pred_check
      _
    $region7: #{tpu_custom_call.1} parent=1 // pred_check_branch
      %27 = sbr.rel (0) target = $region9
    $region8: #{tpu_custom_call.1} parent=1 // pred_region
      %s29 = ssub.s32 8192, 8192
      %30 = vsyncadd [#allocation6], %s29
      %s31 = sshll.u32 [#allocation5], 4
      %s32 = int_to_ptr.vmem [resolvable:$true] %s31
      %37 = dma.hbm_to_vmem [thread:$0]  %s1, 8192, %s32, [#allocation6], 128, 128, 8
    $region9: #{tpu_custom_call.1} parent=1 // pred_fallthru
      _
    // Predicated region
    $region10: #{tpu_custom_call.1} parent=1 // pred_check
      _
    $region11: #{tpu_custom_call.1} parent=1 // pred_check_branch
      %39 = sbr.rel (0) target = $region13
    $region12: #{tpu_custom_call.1} parent=1 // pred_region
      %s41 = ssub.s32 8192, 8192
      %42 = vsyncadd [#allocation6], %s41
      %s43 = sshll.u32 [#allocation7], 4
      %s44 = int_to_ptr.vmem [resolvable:$true] %s43
      %49 = dma.hbm_to_vmem [thread:$0]  %s2, 8192, %s44, [#allocation6], 128, 128, 8
    $region13: #{tpu_custom_call.1} parent=1 // pred_fallthru
      _
    // Predicated region
    $region14: #{tpu_custom_call.1} parent=1 // pred_check
      _
    $region15: #{tpu_custom_call.1} parent=1 // pred_check_branch
      %51 = sbr.rel (0) target = $region17
    $region16: #{tpu_custom_call.1} parent=1 // pred_region
      %s53 = ssub.s32 6144, 6144
      %54 = vsyncadd [#allocation9], %s53
      %s55 = sshll.u32 [#allocation8], 4
      %s56 = int_to_ptr.vmem [resolvable:$true] %s55
      %61 = dma.hbm_to_vmem [thread:$0]  %s3, 6144, %s56, [#allocation9], 128, 128, 8
    $region17: #{tpu_custom_call.1} parent=1 // pred_fallthru
      _
    // Predicated region
    $region18: #{tpu_custom_call.1} parent=1 // pred_check
      _
    $region19: #{tpu_custom_call.1} parent=1 // pred_check_branch
      %63 = sbr.rel (0) target = $region21
    $region20: #{tpu_custom_call.1} parent=1 // pred_region
      _
    $region21: #{tpu_custom_call.1} parent=1 // pred_fallthru
      _
    // Predicated region
    $region22: #{tpu_custom_call.1} parent=1 // pred_check
      _
    $region23: #{tpu_custom_call.1} parent=1 // pred_check_branch
      %65 = sbr.rel (0) target = $region25
    $region24: #{tpu_custom_call.1} parent=1 // pred_region
      %66 = dma.done [#allocation3], 8192
    $region25: #{tpu_custom_call.1} parent=1 // pred_fallthru
      _
    // Predicated region
    $region26: #{tpu_custom_call.1} parent=1 // pred_check
      _
    $region27: #{tpu_custom_call.1} parent=1 // pred_check_branch
      %68 = sbr.rel (0) target = $region29
    $region28: #{tpu_custom_call.1} parent=1 // pred_region
      %69 = dma.done [#allocation6], 8192
    $region29: #{tpu_custom_call.1} parent=1 // pred_fallthru
      _
    // Predicated region
    $region30: #{tpu_custom_call.1} parent=1 // pred_check
      _
    $region31: #{tpu_custom_call.1} parent=1 // pred_check_branch
      %71 = sbr.rel (0) target = $region33
    $region32: #{tpu_custom_call.1} parent=1 // pred_region
      %72 = dma.done [#allocation6], 8192
    $region33: #{tpu_custom_call.1} parent=1 // pred_fallthru
      _
    // Predicated region
    $region34: #{tpu_custom_call.1} parent=1 // pred_check
      _
    $region35: #{tpu_custom_call.1} parent=1 // pred_check_branch
      %74 = sbr.rel (0) target = $region37
    $region36: #{tpu_custom_call.1} parent=1 // pred_region
      %75 = dma.done [#allocation9], 6144
    $region37: #{tpu_custom_call.1} parent=1 // pred_fallthru
      _
    %v76 = vld [vmem:[#allocation2] sm:$0xff]
    %v77 = vld [vmem:[#allocation2 + $0x8] sm:$0xff]
    %v78 = vld [vmem:[#allocation2 + $0x10] sm:$0xff]
    %v79 = vld [vmem:[#allocation2 + $0x18] sm:$0xff]
    %v80 = vld [vmem:[#allocation2 + $0x20] sm:$0xff]
    %v81 = vld [vmem:[#allocation2 + $0x28] sm:$0xff]
    %v82 = vld [vmem:[#allocation2 + $0x30] sm:$0xff]
    %v83 = vld [vmem:[#allocation2 + $0x38] sm:$0xff]
    %v84 = vld [vmem:[#allocation2 + $0x40] sm:$0xff]
    %v85 = vld [vmem:[#allocation2 + $0x48] sm:$0xff]
    %v86 = vld [vmem:[#allocation2 + $0x50] sm:$0xff]
    %v87 = vld [vmem:[#allocation2 + $0x58] sm:$0xff]
    %v88 = vld [vmem:[#allocation2 + $0x60] sm:$0xff]
    %v89 = vld [vmem:[#allocation2 + $0x68] sm:$0xff]
    %v90 = vld [vmem:[#allocation2 + $0x70] sm:$0xff]
    %v91 = vld [vmem:[#allocation2 + $0x78] sm:$0xff]
    %v92 = vld [vmem:[#allocation2 + $0x80] sm:$0xff]
    %v93 = vld [vmem:[#allocation2 + $0x88] sm:$0xff]
    %v94 = vld [vmem:[#allocation2 + $0x90] sm:$0xff]
    %v95 = vld [vmem:[#allocation2 + $0x98] sm:$0xff]
    %v96 = vld [vmem:[#allocation2 + $0xa0] sm:$0xff]
    %v97 = vld [vmem:[#allocation2 + $0xa8] sm:$0xff]
    %v98 = vld [vmem:[#allocation2 + $0xb0] sm:$0xff]
    %v99 = vld [vmem:[#allocation2 + $0xb8] sm:$0xff]
    %v100 = vld [vmem:[#allocation2 + $0xc0] sm:$0xff]
    %v101 = vld [vmem:[#allocation2 + $0xc8] sm:$0xff]
    %v102 = vld [vmem:[#allocation2 + $0xd0] sm:$0xff]
    %v103 = vld [vmem:[#allocation2 + $0xd8] sm:$0xff]
    %v104 = vld [vmem:[#allocation2 + $0xe0] sm:$0xff]
    %v105 = vld [vmem:[#allocation2 + $0xe8] sm:$0xff]
    %v106 = vld [vmem:[#allocation2 + $0xf0] sm:$0xff]
    %v107 = vld [vmem:[#allocation2 + $0xf8] sm:$0xff]
    %v108 = vld [vmem:[#allocation2 + $0x100] sm:$0xff]
    %v109 = vld [vmem:[#allocation2 + $0x108] sm:$0xff]
    %v110 = vld [vmem:[#allocation2 + $0x110] sm:$0xff]
    %v111 = vld [vmem:[#allocation2 + $0x118] sm:$0xff]
    %v112 = vld [vmem:[#allocation2 + $0x120] sm:$0xff]
    %v113 = vld [vmem:[#allocation2 + $0x128] sm:$0xff]
    %v114 = vld [vmem:[#allocation2 + $0x130] sm:$0xff]
    %v115 = vld [vmem:[#allocation2 + $0x138] sm:$0xff]
    %v116 = vld [vmem:[#allocation2 + $0x140] sm:$0xff]
    %v117 = vld [vmem:[#allocation2 + $0x148] sm:$0xff]
    %v118 = vld [vmem:[#allocation2 + $0x150] sm:$0xff]
    %v119 = vld [vmem:[#allocation2 + $0x158] sm:$0xff]
    %v120 = vld [vmem:[#allocation2 + $0x160] sm:$0xff]
    %v121 = vld [vmem:[#allocation2 + $0x168] sm:$0xff]
    %v122 = vld [vmem:[#allocation2 + $0x170] sm:$0xff]
    %v123 = vld [vmem:[#allocation2 + $0x178] sm:$0xff]
    %v124 = vld [vmem:[#allocation2 + $0x180] sm:$0xff]
    %v125 = vld [vmem:[#allocation2 + $0x188] sm:$0xff]
    %v126 = vld [vmem:[#allocation2 + $0x190] sm:$0xff]
    %v127 = vld [vmem:[#allocation2 + $0x198] sm:$0xff]
    %v128 = vld [vmem:[#allocation2 + $0x1a0] sm:$0xff]
    %v129 = vld [vmem:[#allocation2 + $0x1a8] sm:$0xff]
    %v130 = vld [vmem:[#allocation2 + $0x1b0] sm:$0xff]
    %v131 = vld [vmem:[#allocation2 + $0x1b8] sm:$0xff]
    %v132 = vld [vmem:[#allocation2 + $0x1c0] sm:$0xff]
    %v133 = vld [vmem:[#allocation2 + $0x1c8] sm:$0xff]
    %v134 = vld [vmem:[#allocation2 + $0x1d0] sm:$0xff]
    %v135 = vld [vmem:[#allocation2 + $0x1d8] sm:$0xff]
    %v136 = vld [vmem:[#allocation2 + $0x1e0] sm:$0xff]
    %v137 = vld [vmem:[#allocation2 + $0x1e8] sm:$0xff]
    %v138 = vld [vmem:[#allocation2 + $0x1f0] sm:$0xff]
    %v139 = vld [vmem:[#allocation2 + $0x1f8] sm:$0xff]
    %v140 = vld [vmem:[#allocation8] sm:$0xff]
    %v141 = vld [vmem:[#allocation8 + $0x8] sm:$0xff]
    %v142 = vld [vmem:[#allocation8 + $0x10] sm:$0xff]
    %v143 = vld [vmem:[#allocation8 + $0x18] sm:$0xff]
    %v144 = vld [vmem:[#allocation8 + $0x20] sm:$0xff]
    %v145 = vld [vmem:[#allocation8 + $0x28] sm:$0xff]
    %v146 = vld [vmem:[#allocation8 + $0x30] sm:$0xff]
    %v147 = vld [vmem:[#allocation8 + $0x38] sm:$0xff]
    %v148 = vld [vmem:[#allocation8 + $0x40] sm:$0xff]
    %v149 = vld [vmem:[#allocation8 + $0x48] sm:$0xff]
    %v150 = vld [vmem:[#allocation8 + $0x50] sm:$0xff]
    %v151 = vld [vmem:[#allocation8 + $0x58] sm:$0xff]
    %v152 = vld [vmem:[#allocation8 + $0x60] sm:$0xff]
    %v153 = vld [vmem:[#allocation8 + $0x68] sm:$0xff]
    %v154 = vld [vmem:[#allocation8 + $0x70] sm:$0xff]
    %v155 = vld [vmem:[#allocation8 + $0x78] sm:$0xff]
    %v156 = vld [vmem:[%s4] sm:$0x1]
    %v158 = vlaneseq
    %v159 = vshrl.u32 %v158, 7
    %v160 = vsub.s32 0, %v159
    %v161 = vrot.slane %v156, %v160
    %163 = vmatprep.subr.mxu0 0.0
    %164 = vmatpush1.msra.mxu0 %v155
    %165 = vmatprep.subr.mxu0 0.0
    %166 = vmatpush1.msra.mxu0 %v154
    %167 = vmatprep.subr.mxu0 0.0
    %168 = vmatpush1.msra.mxu0 %v153
    %169 = vmatprep.subr.mxu0 0.0
    %170 = vmatpush1.msra.mxu0 %v152
    %171 = vmatprep.subr.mxu0 0.0
    %172 = vmatpush1.msra.mxu0 %v151
    %173 = vmatprep.subr.mxu0 0.0
    %174 = vmatpush1.msra.mxu0 %v150
    %175 = vmatprep.subr.mxu0 0.0
    %176 = vmatpush1.msra.mxu0 %v149
    %177 = vmatprep.subr.mxu0 0.0
    %178 = vmatpush1.msra.mxu0 %v148
    %179 = vmatprep.subr.mxu0 0.0
    %180 = vmatpush1.msra.mxu0 %v147
    %181 = vmatprep.subr.mxu0 0.0
    %182 = vmatpush1.msra.mxu0 %v146
    %183 = vmatprep.subr.mxu0 0.0
    %184 = vmatpush1.msra.mxu0 %v145
    %185 = vmatprep.subr.mxu0 0.0
    %186 = vmatpush1.msra.mxu0 %v144
    %187 = vmatprep.subr.mxu0 0.0
    %188 = vmatpush1.msra.mxu0 %v143
    %189 = vmatprep.subr.mxu0 0.0
    %190 = vmatpush1.msra.mxu0 %v142
    %191 = vmatprep.subr.mxu0 0.0
    %192 = vmatpush1.msra.mxu0 %v141
    %193 = vmatprep.subr.mxu0 0.0
    %194 = vmatpush1.msra.mxu0 %v140
    %195 = vmatprep.subr.mxu0 0.0
    %196 = vmatpush2.msra.mxu0 0.0
    %197 = vmatprep.subr.mxu0 0.0
    %198 = vmatpush2.msra.mxu0 0.0
    %199 = vmatprep.subr.mxu0 0.0
    %200 = vmatpush2.msra.mxu0 0.0
    %201 = vmatprep.subr.mxu0 0.0
    %202 = vmatpush2.msra.mxu0 0.0
    %203 = vmatprep.subr.mxu0 0.0
    %204 = vmatpush2.msra.mxu0 0.0
    %205 = vmatprep.subr.mxu0 0.0
    %206 = vmatpush2.msra.mxu0 0.0
    %207 = vmatprep.subr.mxu0 0.0
    %208 = vmatpush2.msra.mxu0 0.0
    %209 = vmatprep.subr.mxu0 0.0
    %210 = vmatpush2.msra.mxu0 0.0
    %211 = vmatprep.subr.mxu0 0.0
    %212 = vmatpush2.msra.mxu0 0.0
    %213 = vmatprep.subr.mxu0 0.0
    %214 = vmatpush2.msra.mxu0 0.0
    %215 = vmatprep.subr.mxu0 0.0
    %216 = vmatpush2.msra.mxu0 0.0
    %217 = vmatprep.subr.mxu0 0.0
    %218 = vmatpush2.msra.mxu0 0.0
    %219 = vmatprep.subr.mxu0 0.0
    %220 = vmatpush2.msra.mxu0 0.0
    %221 = vmatprep.subr.mxu0 0.0
    %222 = vmatpush2.msra.mxu0 0.0
    %223 = vmatprep.subr.mxu0 0.0
    %224 = vmatpush2.msra.mxu0 0.0
    %225 = vmatprep.subr.mxu0 0.0
    %226 = vmatpush2.msra.mxu0 0.0
    %227 = vmatprep.mubr.f32.mxu0 0.0
    %228 = vmatmul.mubr.f32.gmra.mxu0 %v76
    %v229 = vpop.f32.mrf.mxu0
    %v230 = vadd.f32 %v161, %v229
    %v231 = vpop.f32.mrf.mxu0
    %232 = vmatprep.mubr.f32.mxu0 0.0
    %233 = vmatmul.mubr.f32.gmra.mxu0 %v77
    %v234 = vpop.f32.mrf.mxu0
    %v235 = vadd.f32 %v161, %v234
    %v236 = vpop.f32.mrf.mxu0
    %237 = vmatprep.mubr.f32.mxu0 0.0
    %238 = vmatmul.mubr.f32.gmra.mxu0 %v78
    %v239 = vpop.f32.mrf.mxu0
    %v240 = vadd.f32 %v161, %v239
    %v241 = vpop.f32.mrf.mxu0
    %242 = vmatprep.mubr.f32.mxu0 0.0
    %243 = vmatmul.mubr.f32.gmra.mxu0 %v79
    %v244 = vpop.f32.mrf.mxu0
    %v245 = vadd.f32 %v161, %v244
    %v246 = vpop.f32.mrf.mxu0
    %247 = vmatprep.mubr.f32.mxu0 0.0
    %248 = vmatmul.mubr.f32.gmra.mxu0 %v80
    %v249 = vpop.f32.mrf.mxu0
    %v250 = vadd.f32 %v161, %v249
    %v251 = vpop.f32.mrf.mxu0
    %252 = vmatprep.mubr.f32.mxu0 0.0
    %253 = vmatmul.mubr.f32.gmra.mxu0 %v81
    %v254 = vpop.f32.mrf.mxu0
    %v255 = vadd.f32 %v161, %v254
    %v256 = vpop.f32.mrf.mxu0
    %257 = vmatprep.mubr.f32.mxu0 0.0
    %258 = vmatmul.mubr.f32.gmra.mxu0 %v82
    %v259 = vpop.f32.mrf.mxu0
    %v260 = vadd.f32 %v161, %v259
    %v261 = vpop.f32.mrf.mxu0
    %262 = vmatprep.mubr.f32.mxu0 0.0
    %263 = vmatmul.mubr.f32.gmra.mxu0 %v83
    %v264 = vpop.f32.mrf.mxu0
    %v265 = vadd.f32 %v161, %v264
    %v266 = vpop.f32.mrf.mxu0
    %267 = vmatprep.mubr.f32.mxu0 0.0
    %268 = vmatmul.mubr.f32.gmra.mxu0 %v84
    %v269 = vpop.f32.mrf.mxu0
    %v270 = vadd.f32 %v161, %v269
    %v271 = vpop.f32.mrf.mxu0
    %272 = vmatprep.mubr.f32.mxu0 0.0
    %273 = vmatmul.mubr.f32.gmra.mxu0 %v85
    %v274 = vpop.f32.mrf.mxu0
    %v275 = vadd.f32 %v161, %v274
    %v276 = vpop.f32.mrf.mxu0
    %277 = vmatprep.mubr.f32.mxu0 0.0
    %278 = vmatmul.mubr.f32.gmra.mxu0 %v86
    %v279 = vpop.f32.mrf.mxu0
    %v280 = vadd.f32 %v161, %v279
    %v281 = vpop.f32.mrf.mxu0
    %282 = vmatprep.mubr.f32.mxu0 0.0
    %283 = vmatmul.mubr.f32.gmra.mxu0 %v87
    %v284 = vpop.f32.mrf.mxu0
    %v285 = vadd.f32 %v161, %v284
    %v286 = vpop.f32.mrf.mxu0
    %287 = vmatprep.mubr.f32.mxu0 0.0
    %288 = vmatmul.mubr.f32.gmra.mxu0 %v88
    %v289 = vpop.f32.mrf.mxu0
    %v290 = vadd.f32 %v161, %v289
    %v291 = vpop.f32.mrf.mxu0
    %292 = vmatprep.mubr.f32.mxu0 0.0
    %293 = vmatmul.mubr.f32.gmra.mxu0 %v89
    %v294 = vpop.f32.mrf.mxu0
    %v295 = vadd.f32 %v161, %v294
    %v296 = vpop.f32.mrf.mxu0
    %297 = vmatprep.mubr.f32.mxu0 0.0
    %298 = vmatmul.mubr.f32.gmra.mxu0 %v90
    %v299 = vpop.f32.mrf.mxu0
    %v300 = vadd.f32 %v161, %v299
    %v301 = vpop.f32.mrf.mxu0
    %302 = vmatprep.mubr.f32.mxu0 0.0
    %303 = vmatmul.mubr.f32.gmra.mxu0 %v91
    %v304 = vpop.f32.mrf.mxu0
    %v305 = vadd.f32 %v161, %v304
    %v306 = vpop.f32.mrf.mxu0
    %307 = vmatprep.mubr.f32.mxu0 0.0
    %308 = vmatmul.mubr.f32.gmra.mxu0 %v92
    %v309 = vpop.f32.mrf.mxu0
    %v310 = vadd.f32 %v161, %v309
    %v311 = vpop.f32.mrf.mxu0
    %312 = vmatprep.mubr.f32.mxu0 0.0
    %313 = vmatmul.mubr.f32.gmra.mxu0 %v93
    %v314 = vpop.f32.mrf.mxu0
    %v315 = vadd.f32 %v161, %v314
    %v316 = vpop.f32.mrf.mxu0
    %317 = vmatprep.mubr.f32.mxu0 0.0
    %318 = vmatmul.mubr.f32.gmra.mxu0 %v94
    %v319 = vpop.f32.mrf.mxu0
    %v320 = vadd.f32 %v161, %v319
    %v321 = vpop.f32.mrf.mxu0
    %322 = vmatprep.mubr.f32.mxu0 0.0
    %323 = vmatmul.mubr.f32.gmra.mxu0 %v95
    %v324 = vpop.f32.mrf.mxu0
    %v325 = vadd.f32 %v161, %v324
    %v326 = vpop.f32.mrf.mxu0
    %327 = vmatprep.mubr.f32.mxu0 0.0
    %328 = vmatmul.mubr.f32.gmra.mxu0 %v96
    %v329 = vpop.f32.mrf.mxu0
    %v330 = vadd.f32 %v161, %v329
    %v331 = vpop.f32.mrf.mxu0
    %332 = vmatprep.mubr.f32.mxu0 0.0
    %333 = vmatmul.mubr.f32.gmra.mxu0 %v97
    %v334 = vpop.f32.mrf.mxu0
    %v335 = vadd.f32 %v161, %v334
    %v336 = vpop.f32.mrf.mxu0
    %337 = vmatprep.mubr.f32.mxu0 0.0
    %338 = vmatmul.mubr.f32.gmra.mxu0 %v98
    %v339 = vpop.f32.mrf.mxu0
    %v340 = vadd.f32 %v161, %v339
    %v341 = vpop.f32.mrf.mxu0
    %342 = vmatprep.mubr.f32.mxu0 0.0
    %343 = vmatmul.mubr.f32.gmra.mxu0 %v99
    %v344 = vpop.f32.mrf.mxu0
    %v345 = vadd.f32 %v161, %v344
    %v346 = vpop.f32.mrf.mxu0
    %347 = vmatprep.mubr.f32.mxu0 0.0
    %348 = vmatmul.mubr.f32.gmra.mxu0 %v100
    %v349 = vpop.f32.mrf.mxu0
    %v350 = vadd.f32 %v161, %v349
    %v351 = vpop.f32.mrf.mxu0
    %352 = vmatprep.mubr.f32.mxu0 0.0
    %353 = vmatmul.mubr.f32.gmra.mxu0 %v101
    %v354 = vpop.f32.mrf.mxu0
    %v355 = vadd.f32 %v161, %v354
    %v356 = vpop.f32.mrf.mxu0
    %357 = vmatprep.mubr.f32.mxu0 0.0
    %358 = vmatmul.mubr.f32.gmra.mxu0 %v102
    %v359 = vpop.f32.mrf.mxu0
    %v360 = vadd.f32 %v161, %v359
    %v361 = vpop.f32.mrf.mxu0
    %362 = vmatprep.mubr.f32.mxu0 0.0
    %363 = vmatmul.mubr.f32.gmra.mxu0 %v103
    %v364 = vpop.f32.mrf.mxu0
    %v365 = vadd.f32 %v161, %v364
    %v366 = vpop.f32.mrf.mxu0
    %367 = vmatprep.mubr.f32.mxu0 0.0
    %368 = vmatmul.mubr.f32.gmra.mxu0 %v104
    %v369 = vpop.f32.mrf.mxu0
    %v370 = vadd.f32 %v161, %v369
    %v371 = vpop.f32.mrf.mxu0
    %372 = vmatprep.mubr.f32.mxu0 0.0
    %373 = vmatmul.mubr.f32.gmra.mxu0 %v105
    %v374 = vpop.f32.mrf.mxu0
    %v375 = vadd.f32 %v161, %v374
    %v376 = vpop.f32.mrf.mxu0
    %377 = vmatprep.mubr.f32.mxu0 0.0
    %378 = vmatmul.mubr.f32.gmra.mxu0 %v106
    %v379 = vpop.f32.mrf.mxu0
    %v380 = vadd.f32 %v161, %v379
    %v381 = vpop.f32.mrf.mxu0
    %382 = vmatprep.mubr.f32.mxu0 0.0
    %383 = vmatmul.mubr.f32.gmra.mxu0 %v107
    %v384 = vpop.f32.mrf.mxu0
    %v385 = vadd.f32 %v161, %v384
    %v386 = vpop.f32.mrf.mxu0
    %387 = vmatprep.mubr.f32.mxu0 0.0
    %388 = vmatmul.mubr.f32.gmra.mxu0 %v108
    %v389 = vpop.f32.mrf.mxu0
    %v390 = vadd.f32 %v161, %v389
    %v391 = vpop.f32.mrf.mxu0
    %392 = vmatprep.mubr.f32.mxu0 0.0
    %393 = vmatmul.mubr.f32.gmra.mxu0 %v109
    %v394 = vpop.f32.mrf.mxu0
    %v395 = vadd.f32 %v161, %v394
    %v396 = vpop.f32.mrf.mxu0
    %397 = vmatprep.mubr.f32.mxu0 0.0
    %398 = vmatmul.mubr.f32.gmra.mxu0 %v110
    %v399 = vpop.f32.mrf.mxu0
    %v400 = vadd.f32 %v161, %v399
    %v401 = vpop.f32.mrf.mxu0
    %402 = vmatprep.mubr.f32.mxu0 0.0
    %403 = vmatmul.mubr.f32.gmra.mxu0 %v111
    %v404 = vpop.f32.mrf.mxu0
    %v405 = vadd.f32 %v161, %v404
    %v406 = vpop.f32.mrf.mxu0
    %407 = vmatprep.mubr.f32.mxu0 0.0
    %408 = vmatmul.mubr.f32.gmra.mxu0 %v112
    %v409 = vpop.f32.mrf.mxu0
    %v410 = vadd.f32 %v161, %v409
    %v411 = vpop.f32.mrf.mxu0
    %412 = vmatprep.mubr.f32.mxu0 0.0
    %413 = vmatmul.mubr.f32.gmra.mxu0 %v113
    %v414 = vpop.f32.mrf.mxu0
    %v415 = vadd.f32 %v161, %v414
    %v416 = vpop.f32.mrf.mxu0
    %417 = vmatprep.mubr.f32.mxu0 0.0
    %418 = vmatmul.mubr.f32.gmra.mxu0 %v114
    %v419 = vpop.f32.mrf.mxu0
    %v420 = vadd.f32 %v161, %v419
    %v421 = vpop.f32.mrf.mxu0
    %422 = vmatprep.mubr.f32.mxu0 0.0
    %423 = vmatmul.mubr.f32.gmra.mxu0 %v115
    %v424 = vpop.f32.mrf.mxu0
    %v425 = vadd.f32 %v161, %v424
    %v426 = vpop.f32.mrf.mxu0
    %427 = vmatprep.mubr.f32.mxu0 0.0
    %428 = vmatmul.mubr.f32.gmra.mxu0 %v116
    %v429 = vpop.f32.mrf.mxu0
    %v430 = vadd.f32 %v161, %v429
    %v431 = vpop.f32.mrf.mxu0
    %432 = vmatprep.mubr.f32.mxu0 0.0
    %433 = vmatmul.mubr.f32.gmra.mxu0 %v117
    %v434 = vpop.f32.mrf.mxu0
    %v435 = vadd.f32 %v161, %v434
    %v436 = vpop.f32.mrf.mxu0
    %437 = vmatprep.mubr.f32.mxu0 0.0
    %438 = vmatmul.mubr.f32.gmra.mxu0 %v118
    %v439 = vpop.f32.mrf.mxu0
    %v440 = vadd.f32 %v161, %v439
    %v441 = vpop.f32.mrf.mxu0
    %442 = vmatprep.mubr.f32.mxu0 0.0
    %443 = vmatmul.mubr.f32.gmra.mxu0 %v119
    %v444 = vpop.f32.mrf.mxu0
    %v445 = vadd.f32 %v161, %v444
    %v446 = vpop.f32.mrf.mxu0
    %447 = vmatprep.mubr.f32.mxu0 0.0
    %448 = vmatmul.mubr.f32.gmra.mxu0 %v120
    %v449 = vpop.f32.mrf.mxu0
    %v450 = vadd.f32 %v161, %v449
    %v451 = vpop.f32.mrf.mxu0
    %452 = vmatprep.mubr.f32.mxu0 0.0
    %453 = vmatmul.mubr.f32.gmra.mxu0 %v121
    %v454 = vpop.f32.mrf.mxu0
    %v455 = vadd.f32 %v161, %v454
    %v456 = vpop.f32.mrf.mxu0
    %457 = vmatprep.mubr.f32.mxu0 0.0
    %458 = vmatmul.mubr.f32.gmra.mxu0 %v122
    %v459 = vpop.f32.mrf.mxu0
    %v460 = vadd.f32 %v161, %v459
    %v461 = vpop.f32.mrf.mxu0
    %462 = vmatprep.mubr.f32.mxu0 0.0
    %463 = vmatmul.mubr.f32.gmra.mxu0 %v123
    %v464 = vpop.f32.mrf.mxu0
    %v465 = vadd.f32 %v161, %v464
    %v466 = vpop.f32.mrf.mxu0
    %467 = vmatprep.mubr.f32.mxu0 0.0
    %468 = vmatmul.mubr.f32.gmra.mxu0 %v124
    %v469 = vpop.f32.mrf.mxu0
    %v470 = vadd.f32 %v161, %v469
    %v471 = vpop.f32.mrf.mxu0
    %472 = vmatprep.mubr.f32.mxu0 0.0
    %473 = vmatmul.mubr.f32.gmra.mxu0 %v125
    %v474 = vpop.f32.mrf.mxu0
    %v475 = vadd.f32 %v161, %v474
    %v476 = vpop.f32.mrf.mxu0
    %477 = vmatprep.mubr.f32.mxu0 0.0
    %478 = vmatmul.mubr.f32.gmra.mxu0 %v126
    %v479 = vpop.f32.mrf.mxu0
    %v480 = vadd.f32 %v161, %v479
    %v481 = vpop.f32.mrf.mxu0
    %482 = vmatprep.mubr.f32.mxu0 0.0
    %483 = vmatmul.mubr.f32.gmra.mxu0 %v127
    %v484 = vpop.f32.mrf.mxu0
    %v485 = vadd.f32 %v161, %v484
    %v486 = vpop.f32.mrf.mxu0
    %487 = vmatprep.mubr.f32.mxu0 0.0
    %488 = vmatmul.mubr.f32.gmra.mxu0 %v128
    %v489 = vpop.f32.mrf.mxu0
    %v490 = vadd.f32 %v161, %v489
    %v491 = vpop.f32.mrf.mxu0
    %492 = vmatprep.mubr.f32.mxu0 0.0
    %493 = vmatmul.mubr.f32.gmra.mxu0 %v129
    %v494 = vpop.f32.mrf.mxu0
    %v495 = vadd.f32 %v161, %v494
    %v496 = vpop.f32.mrf.mxu0
    %497 = vmatprep.mubr.f32.mxu0 0.0
    %498 = vmatmul.mubr.f32.gmra.mxu0 %v130
    %v499 = vpop.f32.mrf.mxu0
    %v500 = vadd.f32 %v161, %v499
    %v501 = vpop.f32.mrf.mxu0
    %502 = vmatprep.mubr.f32.mxu0 0.0
    %503 = vmatmul.mubr.f32.gmra.mxu0 %v131
    %v504 = vpop.f32.mrf.mxu0
    %v505 = vadd.f32 %v161, %v504
    %v506 = vpop.f32.mrf.mxu0
    %507 = vmatprep.mubr.f32.mxu0 0.0
    %508 = vmatmul.mubr.f32.gmra.mxu0 %v132
    %v509 = vpop.f32.mrf.mxu0
    %v510 = vadd.f32 %v161, %v509
    %v511 = vpop.f32.mrf.mxu0
    %512 = vmatprep.mubr.f32.mxu0 0.0
    %513 = vmatmul.mubr.f32.gmra.mxu0 %v133
    %v514 = vpop.f32.mrf.mxu0
    %v515 = vadd.f32 %v161, %v514
    %v516 = vpop.f32.mrf.mxu0
    %517 = vmatprep.mubr.f32.mxu0 0.0
    %518 = vmatmul.mubr.f32.gmra.mxu0 %v134
    %v519 = vpop.f32.mrf.mxu0
    %v520 = vadd.f32 %v161, %v519
    %v521 = vpop.f32.mrf.mxu0
    %522 = vmatprep.mubr.f32.mxu0 0.0
    %523 = vmatmul.mubr.f32.gmra.mxu0 %v135
    %v524 = vpop.f32.mrf.mxu0
    %v525 = vadd.f32 %v161, %v524
    %v526 = vpop.f32.mrf.mxu0
    %527 = vmatprep.mubr.f32.mxu0 0.0
    %528 = vmatmul.mubr.f32.gmra.mxu0 %v136
    %v529 = vpop.f32.mrf.mxu0
    %v530 = vadd.f32 %v161, %v529
    %v531 = vpop.f32.mrf.mxu0
    %532 = vmatprep.mubr.f32.mxu0 0.0
    %533 = vmatmul.mubr.f32.gmra.mxu0 %v137
    %v534 = vpop.f32.mrf.mxu0
    %v535 = vadd.f32 %v161, %v534
    %v536 = vpop.f32.mrf.mxu0
    %537 = vmatprep.mubr.f32.mxu0 0.0
    %538 = vmatmul.mubr.f32.gmra.mxu0 %v138
    %v539 = vpop.f32.mrf.mxu0
    %v540 = vadd.f32 %v161, %v539
    %v541 = vpop.f32.mrf.mxu0
    %542 = vmatprep.mubr.f32.mxu0 0.0
    %543 = vmatmul.mubr.f32.gmra.mxu0 %v139
    %v544 = vpop.f32.mrf.mxu0
    %v545 = vadd.f32 %v161, %v544
    %v546 = vpop.f32.mrf.mxu0
    %547 = vdwg.mxu0
    %548 = vst [vmem:[#allocation10] sm:$0xff] %v230
    %549 = vst [vmem:[#allocation10 + $0x18] sm:$0xff] %v235
    %550 = vst [vmem:[#allocation10 + $0x30] sm:$0xff] %v240
    %551 = vst [vmem:[#allocation10 + $0x48] sm:$0xff] %v245
    %552 = vst [vmem:[#allocation10 + $0x60] sm:$0xff] %v250
    %553 = vst [vmem:[#allocation10 + $0x78] sm:$0xff] %v255
    %554 = vst [vmem:[#allocation10 + $0x90] sm:$0xff] %v260
    %555 = vst [vmem:[#allocation10 + $0xa8] sm:$0xff] %v265
    %556 = vst [vmem:[#allocation10 + $0xc0] sm:$0xff] %v270
    %557 = vst [vmem:[#allocation10 + $0xd8] sm:$0xff] %v275
    %558 = vst [vmem:[#allocation10 + $0xf0] sm:$0xff] %v280
    %559 = vst [vmem:[#allocation10 + $0x108] sm:$0xff] %v285
    %560 = vst [vmem:[#allocation10 + $0x120] sm:$0xff] %v290
    %561 = vst [vmem:[#allocation10 + $0x138] sm:$0xff] %v295
    %562 = vst [vmem:[#allocation10 + $0x150] sm:$0xff] %v300
    %563 = vst [vmem:[#allocation10 + $0x168] sm:$0xff] %v305
    %564 = vst [vmem:[#allocation10 + $0x180] sm:$0xff] %v310
    %565 = vst [vmem:[#allocation10 + $0x198] sm:$0xff] %v315
    %566 = vst [vmem:[#allocation10 + $0x1b0] sm:$0xff] %v320
    %567 = vst [vmem:[#allocation10 + $0x1c8] sm:$0xff] %v325
    %568 = vst [vmem:[#allocation10 + $0x1e0] sm:$0xff] %v330
    %569 = vst [vmem:[#allocation10 + $0x1f8] sm:$0xff] %v335
    %570 = vst [vmem:[#allocation10 + $0x210] sm:$0xff] %v340
    %571 = vst [vmem:[#allocation10 + $0x228] sm:$0xff] %v345
    %572 = vst [vmem:[#allocation10 + $0x240] sm:$0xff] %v350
    %573 = vst [vmem:[#allocation10 + $0x258] sm:$0xff] %v355
    %574 = vst [vmem:[#allocation10 + $0x270] sm:$0xff] %v360
    %575 = vst [vmem:[#allocation10 + $0x288] sm:$0xff] %v365
    %576 = vst [vmem:[#allocation10 + $0x2a0] sm:$0xff] %v370
    %577 = vst [vmem:[#allocation10 + $0x2b8] sm:$0xff] %v375
    %578 = vst [vmem:[#allocation10 + $0x2d0] sm:$0xff] %v380
    %579 = vst [vmem:[#allocation10 + $0x2e8] sm:$0xff] %v385
    %580 = vst [vmem:[#allocation10 + $0x300] sm:$0xff] %v390
    %581 = vst [vmem:[#allocation10 + $0x318] sm:$0xff] %v395
    %582 = vst [vmem:[#allocation10 + $0x330] sm:$0xff] %v400
    %583 = vst [vmem:[#allocation10 + $0x348] sm:$0xff] %v405
    %584 = vst [vmem:[#allocation10 + $0x360] sm:$0xff] %v410
    %585 = vst [vmem:[#allocation10 + $0x378] sm:$0xff] %v415
    %586 = vst [vmem:[#allocation10 + $0x390] sm:$0xff] %v420
    %587 = vst [vmem:[#allocation10 + $0x3a8] sm:$0xff] %v425
    %588 = vst [vmem:[#allocation10 + $0x3c0] sm:$0xff] %v430
    %589 = vst [vmem:[#allocation10 + $0x3d8] sm:$0xff] %v435
    %590 = vst [vmem:[#allocation10 + $0x3f0] sm:$0xff] %v440
    %591 = vst [vmem:[#allocation10 + $0x408] sm:$0xff] %v445
    %592 = vst [vmem:[#allocation10 + $0x420] sm:$0xff] %v450
    %593 = vst [vmem:[#allocation10 + $0x438] sm:$0xff] %v455
    %594 = vst [vmem:[#allocation10 + $0x450] sm:$0xff] %v460
    %595 = vst [vmem:[#allocation10 + $0x468] sm:$0xff] %v465
    %596 = vst [vmem:[#allocation10 + $0x480] sm:$0xff] %v470
    %597 = vst [vmem:[#allocation10 + $0x498] sm:$0xff] %v475
    %598 = vst [vmem:[#allocation10 + $0x4b0] sm:$0xff] %v480
    %599 = vst [vmem:[#allocation10 + $0x4c8] sm:$0xff] %v485
    %600 = vst [vmem:[#allocation10 + $0x4e0] sm:$0xff] %v490
    %601 = vst [vmem:[#allocation10 + $0x4f8] sm:$0xff] %v495
    %602 = vst [vmem:[#allocation10 + $0x510] sm:$0xff] %v500
    %603 = vst [vmem:[#allocation10 + $0x528] sm:$0xff] %v505
    %604 = vst [vmem:[#allocation10 + $0x540] sm:$0xff] %v510
    %605 = vst [vmem:[#allocation10 + $0x558] sm:$0xff] %v515
    %606 = vst [vmem:[#allocation10 + $0x570] sm:$0xff] %v520
    %607 = vst [vmem:[#allocation10 + $0x588] sm:$0xff] %v525
    %608 = vst [vmem:[#allocation10 + $0x5a0] sm:$0xff] %v530
    %609 = vst [vmem:[#allocation10 + $0x5b8] sm:$0xff] %v535
    %610 = vst [vmem:[#allocation10 + $0x5d0] sm:$0xff] %v540
    %611 = vst [vmem:[#allocation10 + $0x5e8] sm:$0xff] %v545
    %v612 = vld [vmem:[#allocation5] sm:$0xff]
    %v613 = vld [vmem:[#allocation5 + $0x8] sm:$0xff]
    %v614 = vld [vmem:[#allocation5 + $0x10] sm:$0xff]
    %v615 = vld [vmem:[#allocation5 + $0x18] sm:$0xff]
    %v616 = vld [vmem:[#allocation5 + $0x20] sm:$0xff]
    %v617 = vld [vmem:[#allocation5 + $0x28] sm:$0xff]
    %v618 = vld [vmem:[#allocation5 + $0x30] sm:$0xff]
    %v619 = vld [vmem:[#allocation5 + $0x38] sm:$0xff]
    %v620 = vld [vmem:[#allocation5 + $0x40] sm:$0xff]
    %v621 = vld [vmem:[#allocation5 + $0x48] sm:$0xff]
    %v622 = vld [vmem:[#allocation5 + $0x50] sm:$0xff]
    %v623 = vld [vmem:[#allocation5 + $0x58] sm:$0xff]
    %v624 = vld [vmem:[#allocation5 + $0x60] sm:$0xff]
    %v625 = vld [vmem:[#allocation5 + $0x68] sm:$0xff]
    %v626 = vld [vmem:[#allocation5 + $0x70] sm:$0xff]
    %v627 = vld [vmem:[#allocation5 + $0x78] sm:$0xff]
    %v628 = vld [vmem:[#allocation5 + $0x80] sm:$0xff]
    %v629 = vld [vmem:[#allocation5 + $0x88] sm:$0xff]
    %v630 = vld [vmem:[#allocation5 + $0x90] sm:$0xff]
    %v631 = vld [vmem:[#allocation5 + $0x98] sm:$0xff]
    %v632 = vld [vmem:[#allocation5 + $0xa0] sm:$0xff]
    %v633 = vld [vmem:[#allocation5 + $0xa8] sm:$0xff]
    %v634 = vld [vmem:[#allocation5 + $0xb0] sm:$0xff]
    %v635 = vld [vmem:[#allocation5 + $0xb8] sm:$0xff]
    %v636 = vld [vmem:[#allocation5 + $0xc0] sm:$0xff]
    %v637 = vld [vmem:[#allocation5 + $0xc8] sm:$0xff]
    %v638 = vld [vmem:[#allocation5 + $0xd0] sm:$0xff]
    %v639 = vld [vmem:[#allocation5 + $0xd8] sm:$0xff]
    %v640 = vld [vmem:[#allocation5 + $0xe0] sm:$0xff]
    %v641 = vld [vmem:[#allocation5 + $0xe8] sm:$0xff]
    %v642 = vld [vmem:[#allocation5 + $0xf0] sm:$0xff]
    %v643 = vld [vmem:[#allocation5 + $0xf8] sm:$0xff]
    %v644 = vld [vmem:[#allocation5 + $0x100] sm:$0xff]
    %v645 = vld [vmem:[#allocation5 + $0x108] sm:$0xff]
    %v646 = vld [vmem:[#allocation5 + $0x110] sm:$0xff]
    %v647 = vld [vmem:[#allocation5 + $0x118] sm:$0xff]
    %v648 = vld [vmem:[#allocation5 + $0x120] sm:$0xff]
    %v649 = vld [vmem:[#allocation5 + $0x128] sm:$0xff]
    %v650 = vld [vmem:[#allocation5 + $0x130] sm:$0xff]
    %v651 = vld [vmem:[#allocation5 + $0x138] sm:$0xff]
    %v652 = vld [vmem:[#allocation5 + $0x140] sm:$0xff]
    %v653 = vld [vmem:[#allocation5 + $0x148] sm:$0xff]
    %v654 = vld [vmem:[#allocation5 + $0x150] sm:$0xff]
    %v655 = vld [vmem:[#allocation5 + $0x158] sm:$0xff]
    %v656 = vld [vmem:[#allocation5 + $0x160] sm:$0xff]
    %v657 = vld [vmem:[#allocation5 + $0x168] sm:$0xff]
    %v658 = vld [vmem:[#allocation5 + $0x170] sm:$0xff]
    %v659 = vld [vmem:[#allocation5 + $0x178] sm:$0xff]
    %v660 = vld [vmem:[#allocation5 + $0x180] sm:$0xff]
    %v661 = vld [vmem:[#allocation5 + $0x188] sm:$0xff]
    %v662 = vld [vmem:[#allocation5 + $0x190] sm:$0xff]
    %v663 = vld [vmem:[#allocation5 + $0x198] sm:$0xff]
    %v664 = vld [vmem:[#allocation5 + $0x1a0] sm:$0xff]
    %v665 = vld [vmem:[#allocation5 + $0x1a8] sm:$0xff]
    %v666 = vld [vmem:[#allocation5 + $0x1b0] sm:$0xff]
    %v667 = vld [vmem:[#allocation5 + $0x1b8] sm:$0xff]
    %v668 = vld [vmem:[#allocation5 + $0x1c0] sm:$0xff]
    %v669 = vld [vmem:[#allocation5 + $0x1c8] sm:$0xff]
    %v670 = vld [vmem:[#allocation5 + $0x1d0] sm:$0xff]
    %v671 = vld [vmem:[#allocation5 + $0x1d8] sm:$0xff]
    %v672 = vld [vmem:[#allocation5 + $0x1e0] sm:$0xff]
    %v673 = vld [vmem:[#allocation5 + $0x1e8] sm:$0xff]
    %v674 = vld [vmem:[#allocation5 + $0x1f0] sm:$0xff]
    %v675 = vld [vmem:[#allocation5 + $0x1f8] sm:$0xff]
    %s676 = scalar_lea.vmem [#allocation8], 128
    %v677 = vld [vmem:[%s676] sm:$0xff]
    %v678 = vld [vmem:[%s676 + $0x8] sm:$0xff]
    %v679 = vld [vmem:[%s676 + $0x10] sm:$0xff]
    %v680 = vld [vmem:[%s676 + $0x18] sm:$0xff]
    %v681 = vld [vmem:[%s676 + $0x20] sm:$0xff]
    %v682 = vld [vmem:[%s676 + $0x28] sm:$0xff]
    %v683 = vld [vmem:[%s676 + $0x30] sm:$0xff]
    %v684 = vld [vmem:[%s676 + $0x38] sm:$0xff]
    %v685 = vld [vmem:[%s676 + $0x40] sm:$0xff]
    %v686 = vld [vmem:[%s676 + $0x48] sm:$0xff]
    %v687 = vld [vmem:[%s676 + $0x50] sm:$0xff]
    %v688 = vld [vmem:[%s676 + $0x58] sm:$0xff]
    %v689 = vld [vmem:[%s676 + $0x60] sm:$0xff]
    %v690 = vld [vmem:[%s676 + $0x68] sm:$0xff]
    %v691 = vld [vmem:[%s676 + $0x70] sm:$0xff]
    %v692 = vld [vmem:[%s676 + $0x78] sm:$0xff]
    %s693 = scalar_lea.vmem %s4, 1
    %v694 = vld [vmem:[%s693] sm:$0x1]
    %v696 = vlaneseq
    %v697 = vshrl.u32 %v696, 7
    %v698 = vsub.s32 0, %v697
    %v699 = vrot.slane %v694, %v698
    %701 = vmatprep.subr.mxu0 0.0
    %702 = vmatpush1.msra.mxu0 %v692
    %703 = vmatprep.subr.mxu0 0.0
    %704 = vmatpush1.msra.mxu0 %v691
    %705 = vmatprep.subr.mxu0 0.0
    %706 = vmatpush1.msra.mxu0 %v690
    %707 = vmatprep.subr.mxu0 0.0
    %708 = vmatpush1.msra.mxu0 %v689
    %709 = vmatprep.subr.mxu0 0.0
    %710 = vmatpush1.msra.mxu0 %v688
    %711 = vmatprep.subr.mxu0 0.0
    %712 = vmatpush1.msra.mxu0 %v687
    %713 = vmatprep.subr.mxu0 0.0
    %714 = vmatpush1.msra.mxu0 %v686
    %715 = vmatprep.subr.mxu0 0.0
    %716 = vmatpush1.msra.mxu0 %v685
    %717 = vmatprep.subr.mxu0 0.0
    %718 = vmatpush1.msra.mxu0 %v684
    %719 = vmatprep.subr.mxu0 0.0
    %720 = vmatpush1.msra.mxu0 %v683
    %721 = vmatprep.subr.mxu0 0.0
    %722 = vmatpush1.msra.mxu0 %v682
    %723 = vmatprep.subr.mxu0 0.0
    %724 = vmatpush1.msra.mxu0 %v681
    %725 = vmatprep.subr.mxu0 0.0
    %726 = vmatpush1.msra.mxu0 %v680
    %727 = vmatprep.subr.mxu0 0.0
    %728 = vmatpush1.msra.mxu0 %v679
    %729 = vmatprep.subr.mxu0 0.0
    %730 = vmatpush1.msra.mxu0 %v678
    %731 = vmatprep.subr.mxu0 0.0
    %732 = vmatpush1.msra.mxu0 %v677
    %733 = vmatprep.subr.mxu0 0.0
    %734 = vmatpush2.msra.mxu0 0.0
    %735 = vmatprep.subr.mxu0 0.0
    %736 = vmatpush2.msra.mxu0 0.0
    %737 = vmatprep.subr.mxu0 0.0
    %738 = vmatpush2.msra.mxu0 0.0
    %739 = vmatprep.subr.mxu0 0.0
    %740 = vmatpush2.msra.mxu0 0.0
    %741 = vmatprep.subr.mxu0 0.0
    %742 = vmatpush2.msra.mxu0 0.0
    %743 = vmatprep.subr.mxu0 0.0
    %744 = vmatpush2.msra.mxu0 0.0
    %745 = vmatprep.subr.mxu0 0.0
    %746 = vmatpush2.msra.mxu0 0.0
    %747 = vmatprep.subr.mxu0 0.0
    %748 = vmatpush2.msra.mxu0 0.0
    %749 = vmatprep.subr.mxu0 0.0
    %750 = vmatpush2.msra.mxu0 0.0
    %751 = vmatprep.subr.mxu0 0.0
    %752 = vmatpush2.msra.mxu0 0.0
    %753 = vmatprep.subr.mxu0 0.0
    %754 = vmatpush2.msra.mxu0 0.0
    %755 = vmatprep.subr.mxu0 0.0
    %756 = vmatpush2.msra.mxu0 0.0
    %757 = vmatprep.subr.mxu0 0.0
    %758 = vmatpush2.msra.mxu0 0.0
    %759 = vmatprep.subr.mxu0 0.0
    %760 = vmatpush2.msra.mxu0 0.0
    %761 = vmatprep.subr.mxu0 0.0
    %762 = vmatpush2.msra.mxu0 0.0
    %763 = vmatprep.subr.mxu0 0.0
    %764 = vmatpush2.msra.mxu0 0.0
    %765 = vmatprep.mubr.f32.mxu0 0.0
    %766 = vmatmul.mubr.f32.gmra.mxu0 %v612
    %v767 = vpop.f32.mrf.mxu0
    %v768 = vadd.f32 %v699, %v767
    %v769 = vpop.f32.mrf.mxu0
    %770 = vmatprep.mubr.f32.mxu0 0.0
    %771 = vmatmul.mubr.f32.gmra.mxu0 %v613
    %v772 = vpop.f32.mrf.mxu0
    %v773 = vadd.f32 %v699, %v772
    %v774 = vpop.f32.mrf.mxu0
    %775 = vmatprep.mubr.f32.mxu0 0.0
    %776 = vmatmul.mubr.f32.gmra.mxu0 %v614
    %v777 = vpop.f32.mrf.mxu0
    %v778 = vadd.f32 %v699, %v777
    %v779 = vpop.f32.mrf.mxu0
    %780 = vmatprep.mubr.f32.mxu0 0.0
    %781 = vmatmul.mubr.f32.gmra.mxu0 %v615
    %v782 = vpop.f32.mrf.mxu0
    %v783 = vadd.f32 %v699, %v782
    %v784 = vpop.f32.mrf.mxu0
    %785 = vmatprep.mubr.f32.mxu0 0.0
    %786 = vmatmul.mubr.f32.gmra.mxu0 %v616
    %v787 = vpop.f32.mrf.mxu0
    %v788 = vadd.f32 %v699, %v787
    %v789 = vpop.f32.mrf.mxu0
    %790 = vmatprep.mubr.f32.mxu0 0.0
    %791 = vmatmul.mubr.f32.gmra.mxu0 %v617
    %v792 = vpop.f32.mrf.mxu0
    %v793 = vadd.f32 %v699, %v792
    %v794 = vpop.f32.mrf.mxu0
    %795 = vmatprep.mubr.f32.mxu0 0.0
    %796 = vmatmul.mubr.f32.gmra.mxu0 %v618
    %v797 = vpop.f32.mrf.mxu0
    %v798 = vadd.f32 %v699, %v797
    %v799 = vpop.f32.mrf.mxu0
    %800 = vmatprep.mubr.f32.mxu0 0.0
    %801 = vmatmul.mubr.f32.gmra.mxu0 %v619
    %v802 = vpop.f32.mrf.mxu0
    %v803 = vadd.f32 %v699, %v802
    %v804 = vpop.f32.mrf.mxu0
    %805 = vmatprep.mubr.f32.mxu0 0.0
    %806 = vmatmul.mubr.f32.gmra.mxu0 %v620
    %v807 = vpop.f32.mrf.mxu0
    %v808 = vadd.f32 %v699, %v807
    %v809 = vpop.f32.mrf.mxu0
    %810 = vmatprep.mubr.f32.mxu0 0.0
    %811 = vmatmul.mubr.f32.gmra.mxu0 %v621
    %v812 = vpop.f32.mrf.mxu0
    %v813 = vadd.f32 %v699, %v812
    %v814 = vpop.f32.mrf.mxu0
    %815 = vmatprep.mubr.f32.mxu0 0.0
    %816 = vmatmul.mubr.f32.gmra.mxu0 %v622
    %v817 = vpop.f32.mrf.mxu0
    %v818 = vadd.f32 %v699, %v817
    %v819 = vpop.f32.mrf.mxu0
    %820 = vmatprep.mubr.f32.mxu0 0.0
    %821 = vmatmul.mubr.f32.gmra.mxu0 %v623
    %v822 = vpop.f32.mrf.mxu0
    %v823 = vadd.f32 %v699, %v822
    %v824 = vpop.f32.mrf.mxu0
    %825 = vmatprep.mubr.f32.mxu0 0.0
    %826 = vmatmul.mubr.f32.gmra.mxu0 %v624
    %v827 = vpop.f32.mrf.mxu0
    %v828 = vadd.f32 %v699, %v827
    %v829 = vpop.f32.mrf.mxu0
    %830 = vmatprep.mubr.f32.mxu0 0.0
    %831 = vmatmul.mubr.f32.gmra.mxu0 %v625
    %v832 = vpop.f32.mrf.mxu0
    %v833 = vadd.f32 %v699, %v832
    %v834 = vpop.f32.mrf.mxu0
    %835 = vmatprep.mubr.f32.mxu0 0.0
    %836 = vmatmul.mubr.f32.gmra.mxu0 %v626
    %v837 = vpop.f32.mrf.mxu0
    %v838 = vadd.f32 %v699, %v837
    %v839 = vpop.f32.mrf.mxu0
    %840 = vmatprep.mubr.f32.mxu0 0.0
    %841 = vmatmul.mubr.f32.gmra.mxu0 %v627
    %v842 = vpop.f32.mrf.mxu0
    %v843 = vadd.f32 %v699, %v842
    %v844 = vpop.f32.mrf.mxu0
    %845 = vmatprep.mubr.f32.mxu0 0.0
    %846 = vmatmul.mubr.f32.gmra.mxu0 %v628
    %v847 = vpop.f32.mrf.mxu0
    %v848 = vadd.f32 %v699, %v847
    %v849 = vpop.f32.mrf.mxu0
    %850 = vmatprep.mubr.f32.mxu0 0.0
    %851 = vmatmul.mubr.f32.gmra.mxu0 %v629
    %v852 = vpop.f32.mrf.mxu0
    %v853 = vadd.f32 %v699, %v852
    %v854 = vpop.f32.mrf.mxu0
    %855 = vmatprep.mubr.f32.mxu0 0.0
    %856 = vmatmul.mubr.f32.gmra.mxu0 %v630
    %v857 = vpop.f32.mrf.mxu0
    %v858 = vadd.f32 %v699, %v857
    %v859 = vpop.f32.mrf.mxu0
    %860 = vmatprep.mubr.f32.mxu0 0.0
    %861 = vmatmul.mubr.f32.gmra.mxu0 %v631
    %v862 = vpop.f32.mrf.mxu0
    %v863 = vadd.f32 %v699, %v862
    %v864 = vpop.f32.mrf.mxu0
    %865 = vmatprep.mubr.f32.mxu0 0.0
    %866 = vmatmul.mubr.f32.gmra.mxu0 %v632
    %v867 = vpop.f32.mrf.mxu0
    %v868 = vadd.f32 %v699, %v867
    %v869 = vpop.f32.mrf.mxu0
    %870 = vmatprep.mubr.f32.mxu0 0.0
    %871 = vmatmul.mubr.f32.gmra.mxu0 %v633
    %v872 = vpop.f32.mrf.mxu0
    %v873 = vadd.f32 %v699, %v872
    %v874 = vpop.f32.mrf.mxu0
    %875 = vmatprep.mubr.f32.mxu0 0.0
    %876 = vmatmul.mubr.f32.gmra.mxu0 %v634
    %v877 = vpop.f32.mrf.mxu0
    %v878 = vadd.f32 %v699, %v877
    %v879 = vpop.f32.mrf.mxu0
    %880 = vmatprep.mubr.f32.mxu0 0.0
    %881 = vmatmul.mubr.f32.gmra.mxu0 %v635
    %v882 = vpop.f32.mrf.mxu0
    %v883 = vadd.f32 %v699, %v882
    %v884 = vpop.f32.mrf.mxu0
    %885 = vmatprep.mubr.f32.mxu0 0.0
    %886 = vmatmul.mubr.f32.gmra.mxu0 %v636
    %v887 = vpop.f32.mrf.mxu0
    %v888 = vadd.f32 %v699, %v887
    %v889 = vpop.f32.mrf.mxu0
    %890 = vmatprep.mubr.f32.mxu0 0.0
    %891 = vmatmul.mubr.f32.gmra.mxu0 %v637
    %v892 = vpop.f32.mrf.mxu0
    %v893 = vadd.f32 %v699, %v892
    %v894 = vpop.f32.mrf.mxu0
    %895 = vmatprep.mubr.f32.mxu0 0.0
    %896 = vmatmul.mubr.f32.gmra.mxu0 %v638
    %v897 = vpop.f32.mrf.mxu0
    %v898 = vadd.f32 %v699, %v897
    %v899 = vpop.f32.mrf.mxu0
    %900 = vmatprep.mubr.f32.mxu0 0.0
    %901 = vmatmul.mubr.f32.gmra.mxu0 %v639
    %v902 = vpop.f32.mrf.mxu0
    %v903 = vadd.f32 %v699, %v902
    %v904 = vpop.f32.mrf.mxu0
    %905 = vmatprep.mubr.f32.mxu0 0.0
    %906 = vmatmul.mubr.f32.gmra.mxu0 %v640
    %v907 = vpop.f32.mrf.mxu0
    %v908 = vadd.f32 %v699, %v907
    %v909 = vpop.f32.mrf.mxu0
    %910 = vmatprep.mubr.f32.mxu0 0.0
    %911 = vmatmul.mubr.f32.gmra.mxu0 %v641
    %v912 = vpop.f32.mrf.mxu0
    %v913 = vadd.f32 %v699, %v912
    %v914 = vpop.f32.mrf.mxu0
    %915 = vmatprep.mubr.f32.mxu0 0.0
    %916 = vmatmul.mubr.f32.gmra.mxu0 %v642
    %v917 = vpop.f32.mrf.mxu0
    %v918 = vadd.f32 %v699, %v917
    %v919 = vpop.f32.mrf.mxu0
    %920 = vmatprep.mubr.f32.mxu0 0.0
    %921 = vmatmul.mubr.f32.gmra.mxu0 %v643
    %v922 = vpop.f32.mrf.mxu0
    %v923 = vadd.f32 %v699, %v922
    %v924 = vpop.f32.mrf.mxu0
    %925 = vmatprep.mubr.f32.mxu0 0.0
    %926 = vmatmul.mubr.f32.gmra.mxu0 %v644
    %v927 = vpop.f32.mrf.mxu0
    %v928 = vadd.f32 %v699, %v927
    %v929 = vpop.f32.mrf.mxu0
    %930 = vmatprep.mubr.f32.mxu0 0.0
    %931 = vmatmul.mubr.f32.gmra.mxu0 %v645
    %v932 = vpop.f32.mrf.mxu0
    %v933 = vadd.f32 %v699, %v932
    %v934 = vpop.f32.mrf.mxu0
    %935 = vmatprep.mubr.f32.mxu0 0.0
    %936 = vmatmul.mubr.f32.gmra.mxu0 %v646
    %v937 = vpop.f32.mrf.mxu0
    %v938 = vadd.f32 %v699, %v937
    %v939 = vpop.f32.mrf.mxu0
    %940 = vmatprep.mubr.f32.mxu0 0.0
    %941 = vmatmul.mubr.f32.gmra.mxu0 %v647
    %v942 = vpop.f32.mrf.mxu0
    %v943 = vadd.f32 %v699, %v942
    %v944 = vpop.f32.mrf.mxu0
    %945 = vmatprep.mubr.f32.mxu0 0.0
    %946 = vmatmul.mubr.f32.gmra.mxu0 %v648
    %v947 = vpop.f32.mrf.mxu0
    %v948 = vadd.f32 %v699, %v947
    %v949 = vpop.f32.mrf.mxu0
    %950 = vmatprep.mubr.f32.mxu0 0.0
    %951 = vmatmul.mubr.f32.gmra.mxu0 %v649
    %v952 = vpop.f32.mrf.mxu0
    %v953 = vadd.f32 %v699, %v952
    %v954 = vpop.f32.mrf.mxu0
    %955 = vmatprep.mubr.f32.mxu0 0.0
    %956 = vmatmul.mubr.f32.gmra.mxu0 %v650
    %v957 = vpop.f32.mrf.mxu0
    %v958 = vadd.f32 %v699, %v957
    %v959 = vpop.f32.mrf.mxu0
    %960 = vmatprep.mubr.f32.mxu0 0.0
    %961 = vmatmul.mubr.f32.gmra.mxu0 %v651
    %v962 = vpop.f32.mrf.mxu0
    %v963 = vadd.f32 %v699, %v962
    %v964 = vpop.f32.mrf.mxu0
    %965 = vmatprep.mubr.f32.mxu0 0.0
    %966 = vmatmul.mubr.f32.gmra.mxu0 %v652
    %v967 = vpop.f32.mrf.mxu0
    %v968 = vadd.f32 %v699, %v967
    %v969 = vpop.f32.mrf.mxu0
    %970 = vmatprep.mubr.f32.mxu0 0.0
    %971 = vmatmul.mubr.f32.gmra.mxu0 %v653
    %v972 = vpop.f32.mrf.mxu0
    %v973 = vadd.f32 %v699, %v972
    %v974 = vpop.f32.mrf.mxu0
    %975 = vmatprep.mubr.f32.mxu0 0.0
    %976 = vmatmul.mubr.f32.gmra.mxu0 %v654
    %v977 = vpop.f32.mrf.mxu0
    %v978 = vadd.f32 %v699, %v977
    %v979 = vpop.f32.mrf.mxu0
    %980 = vmatprep.mubr.f32.mxu0 0.0
    %981 = vmatmul.mubr.f32.gmra.mxu0 %v655
    %v982 = vpop.f32.mrf.mxu0
    %v983 = vadd.f32 %v699, %v982
    %v984 = vpop.f32.mrf.mxu0
    %985 = vmatprep.mubr.f32.mxu0 0.0
    %986 = vmatmul.mubr.f32.gmra.mxu0 %v656
    %v987 = vpop.f32.mrf.mxu0
    %v988 = vadd.f32 %v699, %v987
    %v989 = vpop.f32.mrf.mxu0
    %990 = vmatprep.mubr.f32.mxu0 0.0
    %991 = vmatmul.mubr.f32.gmra.mxu0 %v657
    %v992 = vpop.f32.mrf.mxu0
    %v993 = vadd.f32 %v699, %v992
    %v994 = vpop.f32.mrf.mxu0
    %995 = vmatprep.mubr.f32.mxu0 0.0
    %996 = vmatmul.mubr.f32.gmra.mxu0 %v658
    %v997 = vpop.f32.mrf.mxu0
    %v998 = vadd.f32 %v699, %v997
    %v999 = vpop.f32.mrf.mxu0
    %1000 = vmatprep.mubr.f32.mxu0 0.0
    %1001 = vmatmul.mubr.f32.gmra.mxu0 %v659
    %v1002 = vpop.f32.mrf.mxu0
    %v1003 = vadd.f32 %v699, %v1002
    %v1004 = vpop.f32.mrf.mxu0
    %1005 = vmatprep.mubr.f32.mxu0 0.0
    %1006 = vmatmul.mubr.f32.gmra.mxu0 %v660
    %v1007 = vpop.f32.mrf.mxu0
    %v1008 = vadd.f32 %v699, %v1007
    %v1009 = vpop.f32.mrf.mxu0
    %1010 = vmatprep.mubr.f32.mxu0 0.0
    %1011 = vmatmul.mubr.f32.gmra.mxu0 %v661
    %v1012 = vpop.f32.mrf.mxu0
    %v1013 = vadd.f32 %v699, %v1012
    %v1014 = vpop.f32.mrf.mxu0
    %1015 = vmatprep.mubr.f32.mxu0 0.0
    %1016 = vmatmul.mubr.f32.gmra.mxu0 %v662
    %v1017 = vpop.f32.mrf.mxu0
    %v1018 = vadd.f32 %v699, %v1017
    %v1019 = vpop.f32.mrf.mxu0
    %1020 = vmatprep.mubr.f32.mxu0 0.0
    %1021 = vmatmul.mubr.f32.gmra.mxu0 %v663
    %v1022 = vpop.f32.mrf.mxu0
    %v1023 = vadd.f32 %v699, %v1022
    %v1024 = vpop.f32.mrf.mxu0
    %1025 = vmatprep.mubr.f32.mxu0 0.0
    %1026 = vmatmul.mubr.f32.gmra.mxu0 %v664
    %v1027 = vpop.f32.mrf.mxu0
    %v1028 = vadd.f32 %v699, %v1027
    %v1029 = vpop.f32.mrf.mxu0
    %1030 = vmatprep.mubr.f32.mxu0 0.0
    %1031 = vmatmul.mubr.f32.gmra.mxu0 %v665
    %v1032 = vpop.f32.mrf.mxu0
    %v1033 = vadd.f32 %v699, %v1032
    %v1034 = vpop.f32.mrf.mxu0
    %1035 = vmatprep.mubr.f32.mxu0 0.0
    %1036 = vmatmul.mubr.f32.gmra.mxu0 %v666
    %v1037 = vpop.f32.mrf.mxu0
    %v1038 = vadd.f32 %v699, %v1037
    %v1039 = vpop.f32.mrf.mxu0
    %1040 = vmatprep.mubr.f32.mxu0 0.0
    %1041 = vmatmul.mubr.f32.gmra.mxu0 %v667
    %v1042 = vpop.f32.mrf.mxu0
    %v1043 = vadd.f32 %v699, %v1042
    %v1044 = vpop.f32.mrf.mxu0
    %1045 = vmatprep.mubr.f32.mxu0 0.0
    %1046 = vmatmul.mubr.f32.gmra.mxu0 %v668
    %v1047 = vpop.f32.mrf.mxu0
    %v1048 = vadd.f32 %v699, %v1047
    %v1049 = vpop.f32.mrf.mxu0
    %1050 = vmatprep.mubr.f32.mxu0 0.0
    %1051 = vmatmul.mubr.f32.gmra.mxu0 %v669
    %v1052 = vpop.f32.mrf.mxu0
    %v1053 = vadd.f32 %v699, %v1052
    %v1054 = vpop.f32.mrf.mxu0
    %1055 = vmatprep.mubr.f32.mxu0 0.0
    %1056 = vmatmul.mubr.f32.gmra.mxu0 %v670
    %v1057 = vpop.f32.mrf.mxu0
    %v1058 = vadd.f32 %v699, %v1057
    %v1059 = vpop.f32.mrf.mxu0
    %1060 = vmatprep.mubr.f32.mxu0 0.0
    %1061 = vmatmul.mubr.f32.gmra.mxu0 %v671
    %v1062 = vpop.f32.mrf.mxu0
    %v1063 = vadd.f32 %v699, %v1062
    %v1064 = vpop.f32.mrf.mxu0
    %1065 = vmatprep.mubr.f32.mxu0 0.0
    %1066 = vmatmul.mubr.f32.gmra.mxu0 %v672
    %v1067 = vpop.f32.mrf.mxu0
    %v1068 = vadd.f32 %v699, %v1067
    %v1069 = vpop.f32.mrf.mxu0
    %1070 = vmatprep.mubr.f32.mxu0 0.0
    %1071 = vmatmul.mubr.f32.gmra.mxu0 %v673
    %v1072 = vpop.f32.mrf.mxu0
    %v1073 = vadd.f32 %v699, %v1072
    %v1074 = vpop.f32.mrf.mxu0
    %1075 = vmatprep.mubr.f32.mxu0 0.0
    %1076 = vmatmul.mubr.f32.gmra.mxu0 %v674
    %v1077 = vpop.f32.mrf.mxu0
    %v1078 = vadd.f32 %v699, %v1077
    %v1079 = vpop.f32.mrf.mxu0
    %1080 = vmatprep.mubr.f32.mxu0 0.0
    %1081 = vmatmul.mubr.f32.gmra.mxu0 %v675
    %v1082 = vpop.f32.mrf.mxu0
    %v1083 = vadd.f32 %v699, %v1082
    %v1084 = vpop.f32.mrf.mxu0
    %1085 = vdwg.mxu0
    %1086 = vst [vmem:[#allocation10 + $0x8] sm:$0xff] %v768
    %1087 = vst [vmem:[#allocation10 + $0x20] sm:$0xff] %v773
    %1088 = vst [vmem:[#allocation10 + $0x38] sm:$0xff] %v778
    %1089 = vst [vmem:[#allocation10 + $0x50] sm:$0xff] %v783
    %1090 = vst [vmem:[#allocation10 + $0x68] sm:$0xff] %v788
    %1091 = vst [vmem:[#allocation10 + $0x80] sm:$0xff] %v793
    %1092 = vst [vmem:[#allocation10 + $0x98] sm:$0xff] %v798
    %1093 = vst [vmem:[#allocation10 + $0xb0] sm:$0xff] %v803
    %1094 = vst [vmem:[#allocation10 + $0xc8] sm:$0xff] %v808
    %1095 = vst [vmem:[#allocation10 + $0xe0] sm:$0xff] %v813
    %1096 = vst [vmem:[#allocation10 + $0xf8] sm:$0xff] %v818
    %1097 = vst [vmem:[#allocation10 + $0x110] sm:$0xff] %v823
    %1098 = vst [vmem:[#allocation10 + $0x128] sm:$0xff] %v828
    %1099 = vst [vmem:[#allocation10 + $0x140] sm:$0xff] %v833
    %1100 = vst [vmem:[#allocation10 + $0x158] sm:$0xff] %v838
    %1101 = vst [vmem:[#allocation10 + $0x170] sm:$0xff] %v843
    %1102 = vst [vmem:[#allocation10 + $0x188] sm:$0xff] %v848
    %1103 = vst [vmem:[#allocation10 + $0x1a0] sm:$0xff] %v853
    %1104 = vst [vmem:[#allocation10 + $0x1b8] sm:$0xff] %v858
    %1105 = vst [vmem:[#allocation10 + $0x1d0] sm:$0xff] %v863
    %1106 = vst [vmem:[#allocation10 + $0x1e8] sm:$0xff] %v868
    %1107 = vst [vmem:[#allocation10 + $0x200] sm:$0xff] %v873
    %1108 = vst [vmem:[#allocation10 + $0x218] sm:$0xff] %v878
    %1109 = vst [vmem:[#allocation10 + $0x230] sm:$0xff] %v883
    %1110 = vst [vmem:[#allocation10 + $0x248] sm:$0xff] %v888
    %1111 = vst [vmem:[#allocation10 + $0x260] sm:$0xff] %v893
    %1112 = vst [vmem:[#allocation10 + $0x278] sm:$0xff] %v898
    %1113 = vst [vmem:[#allocation10 + $0x290] sm:$0xff] %v903
    %1114 = vst [vmem:[#allocation10 + $0x2a8] sm:$0xff] %v908
    %1115 = vst [vmem:[#allocation10 + $0x2c0] sm:$0xff] %v913
    %1116 = vst [vmem:[#allocation10 + $0x2d8] sm:$0xff] %v918
    %1117 = vst [vmem:[#allocation10 + $0x2f0] sm:$0xff] %v923
    %1118 = vst [vmem:[#allocation10 + $0x308] sm:$0xff] %v928
    %1119 = vst [vmem:[#allocation10 + $0x320] sm:$0xff] %v933
    %1120 = vst [vmem:[#allocation10 + $0x338] sm:$0xff] %v938
    %1121 = vst [vmem:[#allocation10 + $0x350] sm:$0xff] %v943
    %1122 = vst [vmem:[#allocation10 + $0x368] sm:$0xff] %v948
    %1123 = vst [vmem:[#allocation10 + $0x380] sm:$0xff] %v953
    %1124 = vst [vmem:[#allocation10 + $0x398] sm:$0xff] %v958
    %1125 = vst [vmem:[#allocation10 + $0x3b0] sm:$0xff] %v963
    %1126 = vst [vmem:[#allocation10 + $0x3c8] sm:$0xff] %v968
    %1127 = vst [vmem:[#allocation10 + $0x3e0] sm:$0xff] %v973
    %1128 = vst [vmem:[#allocation10 + $0x3f8] sm:$0xff] %v978
    %1129 = vst [vmem:[#allocation10 + $0x410] sm:$0xff] %v983
    %1130 = vst [vmem:[#allocation10 + $0x428] sm:$0xff] %v988
    %1131 = vst [vmem:[#allocation10 + $0x440] sm:$0xff] %v993
    %1132 = vst [vmem:[#allocation10 + $0x458] sm:$0xff] %v998
    %1133 = vst [vmem:[#allocation10 + $0x470] sm:$0xff] %v1003
    %1134 = vst [vmem:[#allocation10 + $0x488] sm:$0xff] %v1008
    %1135 = vst [vmem:[#allocation10 + $0x4a0] sm:$0xff] %v1013
    %1136 = vst [vmem:[#allocation10 + $0x4b8] sm:$0xff] %v1018
    %1137 = vst [vmem:[#allocation10 + $0x4d0] sm:$0xff] %v1023
    %1138 = vst [vmem:[#allocation10 + $0x4e8] sm:$0xff] %v1028
    %1139 = vst [vmem:[#allocation10 + $0x500] sm:$0xff] %v1033
    %1140 = vst [vmem:[#allocation10 + $0x518] sm:$0xff] %v1038
    %1141 = vst [vmem:[#allocation10 + $0x530] sm:$0xff] %v1043
    %1142 = vst [vmem:[#allocation10 + $0x548] sm:$0xff] %v1048
    %1143 = vst [vmem:[#allocation10 + $0x560] sm:$0xff] %v1053
    %1144 = vst [vmem:[#allocation10 + $0x578] sm:$0xff] %v1058
    %1145 = vst [vmem:[#allocation10 + $0x590] sm:$0xff] %v1063
    %1146 = vst [vmem:[#allocation10 + $0x5a8] sm:$0xff] %v1068
    %1147 = vst [vmem:[#allocation10 + $0x5c0] sm:$0xff] %v1073
    %1148 = vst [vmem:[#allocation10 + $0x5d8] sm:$0xff] %v1078
    %1149 = vst [vmem:[#allocation10 + $0x5f0] sm:$0xff] %v1083
    %v1150 = vld [vmem:[#allocation7] sm:$0xff]
    %v1151 = vld [vmem:[#allocation7 + $0x8] sm:$0xff]
    %v1152 = vld [vmem:[#allocation7 + $0x10] sm:$0xff]
    %v1153 = vld [vmem:[#allocation7 + $0x18] sm:$0xff]
    %v1154 = vld [vmem:[#allocation7 + $0x20] sm:$0xff]
    %v1155 = vld [vmem:[#allocation7 + $0x28] sm:$0xff]
    %v1156 = vld [vmem:[#allocation7 + $0x30] sm:$0xff]
    %v1157 = vld [vmem:[#allocation7 + $0x38] sm:$0xff]
    %v1158 = vld [vmem:[#allocation7 + $0x40] sm:$0xff]
    %v1159 = vld [vmem:[#allocation7 + $0x48] sm:$0xff]
    %v1160 = vld [vmem:[#allocation7 + $0x50] sm:$0xff]
    %v1161 = vld [vmem:[#allocation7 + $0x58] sm:$0xff]
    %v1162 = vld [vmem:[#allocation7 + $0x60] sm:$0xff]
    %v1163 = vld [vmem:[#allocation7 + $0x68] sm:$0xff]
    %v1164 = vld [vmem:[#allocation7 + $0x70] sm:$0xff]
    %v1165 = vld [vmem:[#allocation7 + $0x78] sm:$0xff]
    %v1166 = vld [vmem:[#allocation7 + $0x80] sm:$0xff]
    %v1167 = vld [vmem:[#allocation7 + $0x88] sm:$0xff]
    %v1168 = vld [vmem:[#allocation7 + $0x90] sm:$0xff]
    %v1169 = vld [vmem:[#allocation7 + $0x98] sm:$0xff]
    %v1170 = vld [vmem:[#allocation7 + $0xa0] sm:$0xff]
    %v1171 = vld [vmem:[#allocation7 + $0xa8] sm:$0xff]
    %v1172 = vld [vmem:[#allocation7 + $0xb0] sm:$0xff]
    %v1173 = vld [vmem:[#allocation7 + $0xb8] sm:$0xff]
    %v1174 = vld [vmem:[#allocation7 + $0xc0] sm:$0xff]
    %v1175 = vld [vmem:[#allocation7 + $0xc8] sm:$0xff]
    %v1176 = vld [vmem:[#allocation7 + $0xd0] sm:$0xff]
    %v1177 = vld [vmem:[#allocation7 + $0xd8] sm:$0xff]
    %v1178 = vld [vmem:[#allocation7 + $0xe0] sm:$0xff]
    %v1179 = vld [vmem:[#allocation7 + $0xe8] sm:$0xff]
    %v1180 = vld [vmem:[#allocation7 + $0xf0] sm:$0xff]
    %v1181 = vld [vmem:[#allocation7 + $0xf8] sm:$0xff]
    %v1182 = vld [vmem:[#allocation7 + $0x100] sm:$0xff]
    %v1183 = vld [vmem:[#allocation7 + $0x108] sm:$0xff]
    %v1184 = vld [vmem:[#allocation7 + $0x110] sm:$0xff]
    %v1185 = vld [vmem:[#allocation7 + $0x118] sm:$0xff]
    %v1186 = vld [vmem:[#allocation7 + $0x120] sm:$0xff]
    %v1187 = vld [vmem:[#allocation7 + $0x128] sm:$0xff]
    %v1188 = vld [vmem:[#allocation7 + $0x130] sm:$0xff]
    %v1189 = vld [vmem:[#allocation7 + $0x138] sm:$0xff]
    %v1190 = vld [vmem:[#allocation7 + $0x140] sm:$0xff]
    %v1191 = vld [vmem:[#allocation7 + $0x148] sm:$0xff]
    %v1192 = vld [vmem:[#allocation7 + $0x150] sm:$0xff]
    %v1193 = vld [vmem:[#allocation7 + $0x158] sm:$0xff]
    %v1194 = vld [vmem:[#allocation7 + $0x160] sm:$0xff]
    %v1195 = vld [vmem:[#allocation7 + $0x168] sm:$0xff]
    %v1196 = vld [vmem:[#allocation7 + $0x170] sm:$0xff]
    %v1197 = vld [vmem:[#allocation7 + $0x178] sm:$0xff]
    %v1198 = vld [vmem:[#allocation7 + $0x180] sm:$0xff]
    %v1199 = vld [vmem:[#allocation7 + $0x188] sm:$0xff]
    %v1200 = vld [vmem:[#allocation7 + $0x190] sm:$0xff]
    %v1201 = vld [vmem:[#allocation7 + $0x198] sm:$0xff]
    %v1202 = vld [vmem:[#allocation7 + $0x1a0] sm:$0xff]
    %v1203 = vld [vmem:[#allocation7 + $0x1a8] sm:$0xff]
    %v1204 = vld [vmem:[#allocation7 + $0x1b0] sm:$0xff]
    %v1205 = vld [vmem:[#allocation7 + $0x1b8] sm:$0xff]
    %v1206 = vld [vmem:[#allocation7 + $0x1c0] sm:$0xff]
    %v1207 = vld [vmem:[#allocation7 + $0x1c8] sm:$0xff]
    %v1208 = vld [vmem:[#allocation7 + $0x1d0] sm:$0xff]
    %v1209 = vld [vmem:[#allocation7 + $0x1d8] sm:$0xff]
    %v1210 = vld [vmem:[#allocation7 + $0x1e0] sm:$0xff]
    %v1211 = vld [vmem:[#allocation7 + $0x1e8] sm:$0xff]
    %v1212 = vld [vmem:[#allocation7 + $0x1f0] sm:$0xff]
    %v1213 = vld [vmem:[#allocation7 + $0x1f8] sm:$0xff]
    %s1214 = scalar_lea.vmem [#allocation8], 256
    %v1215 = vld [vmem:[%s1214] sm:$0xff]
    %v1216 = vld [vmem:[%s1214 + $0x8] sm:$0xff]
    %v1217 = vld [vmem:[%s1214 + $0x10] sm:$0xff]
    %v1218 = vld [vmem:[%s1214 + $0x18] sm:$0xff]
    %v1219 = vld [vmem:[%s1214 + $0x20] sm:$0xff]
    %v1220 = vld [vmem:[%s1214 + $0x28] sm:$0xff]
    %v1221 = vld [vmem:[%s1214 + $0x30] sm:$0xff]
    %v1222 = vld [vmem:[%s1214 + $0x38] sm:$0xff]
    %v1223 = vld [vmem:[%s1214 + $0x40] sm:$0xff]
    %v1224 = vld [vmem:[%s1214 + $0x48] sm:$0xff]
    %v1225 = vld [vmem:[%s1214 + $0x50] sm:$0xff]
    %v1226 = vld [vmem:[%s1214 + $0x58] sm:$0xff]
    %v1227 = vld [vmem:[%s1214 + $0x60] sm:$0xff]
    %v1228 = vld [vmem:[%s1214 + $0x68] sm:$0xff]
    %v1229 = vld [vmem:[%s1214 + $0x70] sm:$0xff]
    %v1230 = vld [vmem:[%s1214 + $0x78] sm:$0xff]
    %s1231 = scalar_lea.vmem %s4, 2
    %v1232 = vld [vmem:[%s1231] sm:$0x1]
    %v1234 = vlaneseq
    %v1235 = vshrl.u32 %v1234, 7
    %v1236 = vsub.s32 0, %v1235
    %v1237 = vrot.slane %v1232, %v1236
    %1239 = vmatprep.subr.mxu0 0.0
    %1240 = vmatpush1.msra.mxu0 %v1230
    %1241 = vmatprep.subr.mxu0 0.0
    %1242 = vmatpush1.msra.mxu0 %v1229
    %1243 = vmatprep.subr.mxu0 0.0
    %1244 = vmatpush1.msra.mxu0 %v1228
    %1245 = vmatprep.subr.mxu0 0.0
    %1246 = vmatpush1.msra.mxu0 %v1227
    %1247 = vmatprep.subr.mxu0 0.0
    %1248 = vmatpush1.msra.mxu0 %v1226
    %1249 = vmatprep.subr.mxu0 0.0
    %1250 = vmatpush1.msra.mxu0 %v1225
    %1251 = vmatprep.subr.mxu0 0.0
    %1252 = vmatpush1.msra.mxu0 %v1224
    %1253 = vmatprep.subr.mxu0 0.0
    %1254 = vmatpush1.msra.mxu0 %v1223
    %1255 = vmatprep.subr.mxu0 0.0
    %1256 = vmatpush1.msra.mxu0 %v1222
    %1257 = vmatprep.subr.mxu0 0.0
    %1258 = vmatpush1.msra.mxu0 %v1221
    %1259 = vmatprep.subr.mxu0 0.0
    %1260 = vmatpush1.msra.mxu0 %v1220
    %1261 = vmatprep.subr.mxu0 0.0
    %1262 = vmatpush1.msra.mxu0 %v1219
    %1263 = vmatprep.subr.mxu0 0.0
    %1264 = vmatpush1.msra.mxu0 %v1218
    %1265 = vmatprep.subr.mxu0 0.0
    %1266 = vmatpush1.msra.mxu0 %v1217
    %1267 = vmatprep.subr.mxu0 0.0
    %1268 = vmatpush1.msra.mxu0 %v1216
    %1269 = vmatprep.subr.mxu0 0.0
    %1270 = vmatpush1.msra.mxu0 %v1215
    %1271 = vmatprep.subr.mxu0 0.0
    %1272 = vmatpush2.msra.mxu0 0.0
    %1273 = vmatprep.subr.mxu0 0.0
    %1274 = vmatpush2.msra.mxu0 0.0
    %1275 = vmatprep.subr.mxu0 0.0
    %1276 = vmatpush2.msra.mxu0 0.0
    %1277 = vmatprep.subr.mxu0 0.0
    %1278 = vmatpush2.msra.mxu0 0.0
    %1279 = vmatprep.subr.mxu0 0.0
    %1280 = vmatpush2.msra.mxu0 0.0
    %1281 = vmatprep.subr.mxu0 0.0
    %1282 = vmatpush2.msra.mxu0 0.0
    %1283 = vmatprep.subr.mxu0 0.0
    %1284 = vmatpush2.msra.mxu0 0.0
    %1285 = vmatprep.subr.mxu0 0.0
    %1286 = vmatpush2.msra.mxu0 0.0
    %1287 = vmatprep.subr.mxu0 0.0
    %1288 = vmatpush2.msra.mxu0 0.0
    %1289 = vmatprep.subr.mxu0 0.0
    %1290 = vmatpush2.msra.mxu0 0.0
    %1291 = vmatprep.subr.mxu0 0.0
    %1292 = vmatpush2.msra.mxu0 0.0
    %1293 = vmatprep.subr.mxu0 0.0
    %1294 = vmatpush2.msra.mxu0 0.0
    %1295 = vmatprep.subr.mxu0 0.0
    %1296 = vmatpush2.msra.mxu0 0.0
    %1297 = vmatprep.subr.mxu0 0.0
    %1298 = vmatpush2.msra.mxu0 0.0
    %1299 = vmatprep.subr.mxu0 0.0
    %1300 = vmatpush2.msra.mxu0 0.0
    %1301 = vmatprep.subr.mxu0 0.0
    %1302 = vmatpush2.msra.mxu0 0.0
    %1303 = vmatprep.mubr.f32.mxu0 0.0
    %1304 = vmatmul.mubr.f32.gmra.mxu0 %v1150
    %v1305 = vpop.f32.mrf.mxu0
    %v1306 = vadd.f32 %v1237, %v1305
    %v1307 = vpop.f32.mrf.mxu0
    %1308 = vmatprep.mubr.f32.mxu0 0.0
    %1309 = vmatmul.mubr.f32.gmra.mxu0 %v1151
    %v1310 = vpop.f32.mrf.mxu0
    %v1311 = vadd.f32 %v1237, %v1310
    %v1312 = vpop.f32.mrf.mxu0
    %1313 = vmatprep.mubr.f32.mxu0 0.0
    %1314 = vmatmul.mubr.f32.gmra.mxu0 %v1152
    %v1315 = vpop.f32.mrf.mxu0
    %v1316 = vadd.f32 %v1237, %v1315
    %v1317 = vpop.f32.mrf.mxu0
    %1318 = vmatprep.mubr.f32.mxu0 0.0
    %1319 = vmatmul.mubr.f32.gmra.mxu0 %v1153
    %v1320 = vpop.f32.mrf.mxu0
    %v1321 = vadd.f32 %v1237, %v1320
    %v1322 = vpop.f32.mrf.mxu0
    %1323 = vmatprep.mubr.f32.mxu0 0.0
    %1324 = vmatmul.mubr.f32.gmra.mxu0 %v1154
    %v1325 = vpop.f32.mrf.mxu0
    %v1326 = vadd.f32 %v1237, %v1325
    %v1327 = vpop.f32.mrf.mxu0
    %1328 = vmatprep.mubr.f32.mxu0 0.0
    %1329 = vmatmul.mubr.f32.gmra.mxu0 %v1155
    %v1330 = vpop.f32.mrf.mxu0
    %v1331 = vadd.f32 %v1237, %v1330
    %v1332 = vpop.f32.mrf.mxu0
    %1333 = vmatprep.mubr.f32.mxu0 0.0
    %1334 = vmatmul.mubr.f32.gmra.mxu0 %v1156
    %v1335 = vpop.f32.mrf.mxu0
    %v1336 = vadd.f32 %v1237, %v1335
    %v1337 = vpop.f32.mrf.mxu0
    %1338 = vmatprep.mubr.f32.mxu0 0.0
    %1339 = vmatmul.mubr.f32.gmra.mxu0 %v1157
    %v1340 = vpop.f32.mrf.mxu0
    %v1341 = vadd.f32 %v1237, %v1340
    %v1342 = vpop.f32.mrf.mxu0
    %1343 = vmatprep.mubr.f32.mxu0 0.0
    %1344 = vmatmul.mubr.f32.gmra.mxu0 %v1158
    %v1345 = vpop.f32.mrf.mxu0
    %v1346 = vadd.f32 %v1237, %v1345
    %v1347 = vpop.f32.mrf.mxu0
    %1348 = vmatprep.mubr.f32.mxu0 0.0
    %1349 = vmatmul.mubr.f32.gmra.mxu0 %v1159
    %v1350 = vpop.f32.mrf.mxu0
    %v1351 = vadd.f32 %v1237, %v1350
    %v1352 = vpop.f32.mrf.mxu0
    %1353 = vmatprep.mubr.f32.mxu0 0.0
    %1354 = vmatmul.mubr.f32.gmra.mxu0 %v1160
    %v1355 = vpop.f32.mrf.mxu0
    %v1356 = vadd.f32 %v1237, %v1355
    %v1357 = vpop.f32.mrf.mxu0
    %1358 = vmatprep.mubr.f32.mxu0 0.0
    %1359 = vmatmul.mubr.f32.gmra.mxu0 %v1161
    %v1360 = vpop.f32.mrf.mxu0
    %v1361 = vadd.f32 %v1237, %v1360
    %v1362 = vpop.f32.mrf.mxu0
    %1363 = vmatprep.mubr.f32.mxu0 0.0
    %1364 = vmatmul.mubr.f32.gmra.mxu0 %v1162
    %v1365 = vpop.f32.mrf.mxu0
    %v1366 = vadd.f32 %v1237, %v1365
    %v1367 = vpop.f32.mrf.mxu0
    %1368 = vmatprep.mubr.f32.mxu0 0.0
    %1369 = vmatmul.mubr.f32.gmra.mxu0 %v1163
    %v1370 = vpop.f32.mrf.mxu0
    %v1371 = vadd.f32 %v1237, %v1370
    %v1372 = vpop.f32.mrf.mxu0
    %1373 = vmatprep.mubr.f32.mxu0 0.0
    %1374 = vmatmul.mubr.f32.gmra.mxu0 %v1164
    %v1375 = vpop.f32.mrf.mxu0
    %v1376 = vadd.f32 %v1237, %v1375
    %v1377 = vpop.f32.mrf.mxu0
    %1378 = vmatprep.mubr.f32.mxu0 0.0
    %1379 = vmatmul.mubr.f32.gmra.mxu0 %v1165
    %v1380 = vpop.f32.mrf.mxu0
    %v1381 = vadd.f32 %v1237, %v1380
    %v1382 = vpop.f32.mrf.mxu0
    %1383 = vmatprep.mubr.f32.mxu0 0.0
    %1384 = vmatmul.mubr.f32.gmra.mxu0 %v1166
    %v1385 = vpop.f32.mrf.mxu0
    %v1386 = vadd.f32 %v1237, %v1385
    %v1387 = vpop.f32.mrf.mxu0
    %1388 = vmatprep.mubr.f32.mxu0 0.0
    %1389 = vmatmul.mubr.f32.gmra.mxu0 %v1167
    %v1390 = vpop.f32.mrf.mxu0
    %v1391 = vadd.f32 %v1237, %v1390
    %v1392 = vpop.f32.mrf.mxu0
    %1393 = vmatprep.mubr.f32.mxu0 0.0
    %1394 = vmatmul.mubr.f32.gmra.mxu0 %v1168
    %v1395 = vpop.f32.mrf.mxu0
    %v1396 = vadd.f32 %v1237, %v1395
    %v1397 = vpop.f32.mrf.mxu0
    %1398 = vmatprep.mubr.f32.mxu0 0.0
    %1399 = vmatmul.mubr.f32.gmra.mxu0 %v1169
    %v1400 = vpop.f32.mrf.mxu0
    %v1401 = vadd.f32 %v1237, %v1400
    %v1402 = vpop.f32.mrf.mxu0
    %1403 = vmatprep.mubr.f32.mxu0 0.0
    %1404 = vmatmul.mubr.f32.gmra.mxu0 %v1170
    %v1405 = vpop.f32.mrf.mxu0
    %v1406 = vadd.f32 %v1237, %v1405
    %v1407 = vpop.f32.mrf.mxu0
    %1408 = vmatprep.mubr.f32.mxu0 0.0
    %1409 = vmatmul.mubr.f32.gmra.mxu0 %v1171
    %v1410 = vpop.f32.mrf.mxu0
    %v1411 = vadd.f32 %v1237, %v1410
    %v1412 = vpop.f32.mrf.mxu0
    %1413 = vmatprep.mubr.f32.mxu0 0.0
    %1414 = vmatmul.mubr.f32.gmra.mxu0 %v1172
    %v1415 = vpop.f32.mrf.mxu0
    %v1416 = vadd.f32 %v1237, %v1415
    %v1417 = vpop.f32.mrf.mxu0
    %1418 = vmatprep.mubr.f32.mxu0 0.0
    %1419 = vmatmul.mubr.f32.gmra.mxu0 %v1173
    %v1420 = vpop.f32.mrf.mxu0
    %v1421 = vadd.f32 %v1237, %v1420
    %v1422 = vpop.f32.mrf.mxu0
    %1423 = vmatprep.mubr.f32.mxu0 0.0
    %1424 = vmatmul.mubr.f32.gmra.mxu0 %v1174
    %v1425 = vpop.f32.mrf.mxu0
    %v1426 = vadd.f32 %v1237, %v1425
    %v1427 = vpop.f32.mrf.mxu0
    %1428 = vmatprep.mubr.f32.mxu0 0.0
    %1429 = vmatmul.mubr.f32.gmra.mxu0 %v1175
    %v1430 = vpop.f32.mrf.mxu0
    %v1431 = vadd.f32 %v1237, %v1430
    %v1432 = vpop.f32.mrf.mxu0
    %1433 = vmatprep.mubr.f32.mxu0 0.0
    %1434 = vmatmul.mubr.f32.gmra.mxu0 %v1176
    %v1435 = vpop.f32.mrf.mxu0
    %v1436 = vadd.f32 %v1237, %v1435
    %v1437 = vpop.f32.mrf.mxu0
    %1438 = vmatprep.mubr.f32.mxu0 0.0
    %1439 = vmatmul.mubr.f32.gmra.mxu0 %v1177
    %v1440 = vpop.f32.mrf.mxu0
    %v1441 = vadd.f32 %v1237, %v1440
    %v1442 = vpop.f32.mrf.mxu0
    %1443 = vmatprep.mubr.f32.mxu0 0.0
    %1444 = vmatmul.mubr.f32.gmra.mxu0 %v1178
    %v1445 = vpop.f32.mrf.mxu0
    %v1446 = vadd.f32 %v1237, %v1445
    %v1447 = vpop.f32.mrf.mxu0
    %1448 = vmatprep.mubr.f32.mxu0 0.0
    %1449 = vmatmul.mubr.f32.gmra.mxu0 %v1179
    %v1450 = vpop.f32.mrf.mxu0
    %v1451 = vadd.f32 %v1237, %v1450
    %v1452 = vpop.f32.mrf.mxu0
    %1453 = vmatprep.mubr.f32.mxu0 0.0
    %1454 = vmatmul.mubr.f32.gmra.mxu0 %v1180
    %v1455 = vpop.f32.mrf.mxu0
    %v1456 = vadd.f32 %v1237, %v1455
    %v1457 = vpop.f32.mrf.mxu0
    %1458 = vmatprep.mubr.f32.mxu0 0.0
    %1459 = vmatmul.mubr.f32.gmra.mxu0 %v1181
    %v1460 = vpop.f32.mrf.mxu0
    %v1461 = vadd.f32 %v1237, %v1460
    %v1462 = vpop.f32.mrf.mxu0
    %1463 = vmatprep.mubr.f32.mxu0 0.0
    %1464 = vmatmul.mubr.f32.gmra.mxu0 %v1182
    %v1465 = vpop.f32.mrf.mxu0
    %v1466 = vadd.f32 %v1237, %v1465
    %v1467 = vpop.f32.mrf.mxu0
    %1468 = vmatprep.mubr.f32.mxu0 0.0
    %1469 = vmatmul.mubr.f32.gmra.mxu0 %v1183
    %v1470 = vpop.f32.mrf.mxu0
    %v1471 = vadd.f32 %v1237, %v1470
    %v1472 = vpop.f32.mrf.mxu0
    %1473 = vmatprep.mubr.f32.mxu0 0.0
    %1474 = vmatmul.mubr.f32.gmra.mxu0 %v1184
    %v1475 = vpop.f32.mrf.mxu0
    %v1476 = vadd.f32 %v1237, %v1475
    %v1477 = vpop.f32.mrf.mxu0
    %1478 = vmatprep.mubr.f32.mxu0 0.0
    %1479 = vmatmul.mubr.f32.gmra.mxu0 %v1185
    %v1480 = vpop.f32.mrf.mxu0
    %v1481 = vadd.f32 %v1237, %v1480
    %v1482 = vpop.f32.mrf.mxu0
    %1483 = vmatprep.mubr.f32.mxu0 0.0
    %1484 = vmatmul.mubr.f32.gmra.mxu0 %v1186
    %v1485 = vpop.f32.mrf.mxu0
    %v1486 = vadd.f32 %v1237, %v1485
    %v1487 = vpop.f32.mrf.mxu0
    %1488 = vmatprep.mubr.f32.mxu0 0.0
    %1489 = vmatmul.mubr.f32.gmra.mxu0 %v1187
    %v1490 = vpop.f32.mrf.mxu0
    %v1491 = vadd.f32 %v1237, %v1490
    %v1492 = vpop.f32.mrf.mxu0
    %1493 = vmatprep.mubr.f32.mxu0 0.0
    %1494 = vmatmul.mubr.f32.gmra.mxu0 %v1188
    %v1495 = vpop.f32.mrf.mxu0
    %v1496 = vadd.f32 %v1237, %v1495
    %v1497 = vpop.f32.mrf.mxu0
    %1498 = vmatprep.mubr.f32.mxu0 0.0
    %1499 = vmatmul.mubr.f32.gmra.mxu0 %v1189
    %v1500 = vpop.f32.mrf.mxu0
    %v1501 = vadd.f32 %v1237, %v1500
    %v1502 = vpop.f32.mrf.mxu0
    %1503 = vmatprep.mubr.f32.mxu0 0.0
    %1504 = vmatmul.mubr.f32.gmra.mxu0 %v1190
    %v1505 = vpop.f32.mrf.mxu0
    %v1506 = vadd.f32 %v1237, %v1505
    %v1507 = vpop.f32.mrf.mxu0
    %1508 = vmatprep.mubr.f32.mxu0 0.0
    %1509 = vmatmul.mubr.f32.gmra.mxu0 %v1191
    %v1510 = vpop.f32.mrf.mxu0
    %v1511 = vadd.f32 %v1237, %v1510
    %v1512 = vpop.f32.mrf.mxu0
    %1513 = vmatprep.mubr.f32.mxu0 0.0
    %1514 = vmatmul.mubr.f32.gmra.mxu0 %v1192
    %v1515 = vpop.f32.mrf.mxu0
    %v1516 = vadd.f32 %v1237, %v1515
    %v1517 = vpop.f32.mrf.mxu0
    %1518 = vmatprep.mubr.f32.mxu0 0.0
    %1519 = vmatmul.mubr.f32.gmra.mxu0 %v1193
    %v1520 = vpop.f32.mrf.mxu0
    %v1521 = vadd.f32 %v1237, %v1520
    %v1522 = vpop.f32.mrf.mxu0
    %1523 = vmatprep.mubr.f32.mxu0 0.0
    %1524 = vmatmul.mubr.f32.gmra.mxu0 %v1194
    %v1525 = vpop.f32.mrf.mxu0
    %v1526 = vadd.f32 %v1237, %v1525
    %v1527 = vpop.f32.mrf.mxu0
    %1528 = vmatprep.mubr.f32.mxu0 0.0
    %1529 = vmatmul.mubr.f32.gmra.mxu0 %v1195
    %v1530 = vpop.f32.mrf.mxu0
    %v1531 = vadd.f32 %v1237, %v1530
    %v1532 = vpop.f32.mrf.mxu0
    %1533 = vmatprep.mubr.f32.mxu0 0.0
    %1534 = vmatmul.mubr.f32.gmra.mxu0 %v1196
    %v1535 = vpop.f32.mrf.mxu0
    %v1536 = vadd.f32 %v1237, %v1535
    %v1537 = vpop.f32.mrf.mxu0
    %1538 = vmatprep.mubr.f32.mxu0 0.0
    %1539 = vmatmul.mubr.f32.gmra.mxu0 %v1197
    %v1540 = vpop.f32.mrf.mxu0
    %v1541 = vadd.f32 %v1237, %v1540
    %v1542 = vpop.f32.mrf.mxu0
    %1543 = vmatprep.mubr.f32.mxu0 0.0
    %1544 = vmatmul.mubr.f32.gmra.mxu0 %v1198
    %v1545 = vpop.f32.mrf.mxu0
    %v1546 = vadd.f32 %v1237, %v1545
    %v1547 = vpop.f32.mrf.mxu0
    %1548 = vmatprep.mubr.f32.mxu0 0.0
    %1549 = vmatmul.mubr.f32.gmra.mxu0 %v1199
    %v1550 = vpop.f32.mrf.mxu0
    %v1551 = vadd.f32 %v1237, %v1550
    %v1552 = vpop.f32.mrf.mxu0
    %1553 = vmatprep.mubr.f32.mxu0 0.0
    %1554 = vmatmul.mubr.f32.gmra.mxu0 %v1200
    %v1555 = vpop.f32.mrf.mxu0
    %v1556 = vadd.f32 %v1237, %v1555
    %v1557 = vpop.f32.mrf.mxu0
    %1558 = vmatprep.mubr.f32.mxu0 0.0
    %1559 = vmatmul.mubr.f32.gmra.mxu0 %v1201
    %v1560 = vpop.f32.mrf.mxu0
    %v1561 = vadd.f32 %v1237, %v1560
    %v1562 = vpop.f32.mrf.mxu0
    %1563 = vmatprep.mubr.f32.mxu0 0.0
    %1564 = vmatmul.mubr.f32.gmra.mxu0 %v1202
    %v1565 = vpop.f32.mrf.mxu0
    %v1566 = vadd.f32 %v1237, %v1565
    %v1567 = vpop.f32.mrf.mxu0
    %1568 = vmatprep.mubr.f32.mxu0 0.0
    %1569 = vmatmul.mubr.f32.gmra.mxu0 %v1203
    %v1570 = vpop.f32.mrf.mxu0
    %v1571 = vadd.f32 %v1237, %v1570
    %v1572 = vpop.f32.mrf.mxu0
    %1573 = vmatprep.mubr.f32.mxu0 0.0
    %1574 = vmatmul.mubr.f32.gmra.mxu0 %v1204
    %v1575 = vpop.f32.mrf.mxu0
    %v1576 = vadd.f32 %v1237, %v1575
    %v1577 = vpop.f32.mrf.mxu0
    %1578 = vmatprep.mubr.f32.mxu0 0.0
    %1579 = vmatmul.mubr.f32.gmra.mxu0 %v1205
    %v1580 = vpop.f32.mrf.mxu0
    %v1581 = vadd.f32 %v1237, %v1580
    %v1582 = vpop.f32.mrf.mxu0
    %1583 = vmatprep.mubr.f32.mxu0 0.0
    %1584 = vmatmul.mubr.f32.gmra.mxu0 %v1206
    %v1585 = vpop.f32.mrf.mxu0
    %v1586 = vadd.f32 %v1237, %v1585
    %v1587 = vpop.f32.mrf.mxu0
    %1588 = vmatprep.mubr.f32.mxu0 0.0
    %1589 = vmatmul.mubr.f32.gmra.mxu0 %v1207
    %v1590 = vpop.f32.mrf.mxu0
    %v1591 = vadd.f32 %v1237, %v1590
    %v1592 = vpop.f32.mrf.mxu0
    %1593 = vmatprep.mubr.f32.mxu0 0.0
    %1594 = vmatmul.mubr.f32.gmra.mxu0 %v1208
    %v1595 = vpop.f32.mrf.mxu0
    %v1596 = vadd.f32 %v1237, %v1595
    %v1597 = vpop.f32.mrf.mxu0
    %1598 = vmatprep.mubr.f32.mxu0 0.0
    %1599 = vmatmul.mubr.f32.gmra.mxu0 %v1209
    %v1600 = vpop.f32.mrf.mxu0
    %v1601 = vadd.f32 %v1237, %v1600
    %v1602 = vpop.f32.mrf.mxu0
    %1603 = vmatprep.mubr.f32.mxu0 0.0
    %1604 = vmatmul.mubr.f32.gmra.mxu0 %v1210
    %v1605 = vpop.f32.mrf.mxu0
    %v1606 = vadd.f32 %v1237, %v1605
    %v1607 = vpop.f32.mrf.mxu0
    %1608 = vmatprep.mubr.f32.mxu0 0.0
    %1609 = vmatmul.mubr.f32.gmra.mxu0 %v1211
    %v1610 = vpop.f32.mrf.mxu0
    %v1611 = vadd.f32 %v1237, %v1610
    %v1612 = vpop.f32.mrf.mxu0
    %1613 = vmatprep.mubr.f32.mxu0 0.0
    %1614 = vmatmul.mubr.f32.gmra.mxu0 %v1212
    %v1615 = vpop.f32.mrf.mxu0
    %v1616 = vadd.f32 %v1237, %v1615
    %v1617 = vpop.f32.mrf.mxu0
    %1618 = vmatprep.mubr.f32.mxu0 0.0
    %1619 = vmatmul.mubr.f32.gmra.mxu0 %v1213
    %v1620 = vpop.f32.mrf.mxu0
    %v1621 = vadd.f32 %v1237, %v1620
    %v1622 = vpop.f32.mrf.mxu0
    %1623 = vdwg.mxu0
    %1624 = vst [vmem:[#allocation10 + $0x10] sm:$0xff] %v1306
    %1625 = vst [vmem:[#allocation10 + $0x28] sm:$0xff] %v1311
    %1626 = vst [vmem:[#allocation10 + $0x40] sm:$0xff] %v1316
    %1627 = vst [vmem:[#allocation10 + $0x58] sm:$0xff] %v1321
    %1628 = vst [vmem:[#allocation10 + $0x70] sm:$0xff] %v1326
    %1629 = vst [vmem:[#allocation10 + $0x88] sm:$0xff] %v1331
    %1630 = vst [vmem:[#allocation10 + $0xa0] sm:$0xff] %v1336
    %1631 = vst [vmem:[#allocation10 + $0xb8] sm:$0xff] %v1341
    %1632 = vst [vmem:[#allocation10 + $0xd0] sm:$0xff] %v1346
    %1633 = vst [vmem:[#allocation10 + $0xe8] sm:$0xff] %v1351
    %1634 = vst [vmem:[#allocation10 + $0x100] sm:$0xff] %v1356
    %1635 = vst [vmem:[#allocation10 + $0x118] sm:$0xff] %v1361
    %1636 = vst [vmem:[#allocation10 + $0x130] sm:$0xff] %v1366
    %1637 = vst [vmem:[#allocation10 + $0x148] sm:$0xff] %v1371
    %1638 = vst [vmem:[#allocation10 + $0x160] sm:$0xff] %v1376
    %1639 = vst [vmem:[#allocation10 + $0x178] sm:$0xff] %v1381
    %1640 = vst [vmem:[#allocation10 + $0x190] sm:$0xff] %v1386
    %1641 = vst [vmem:[#allocation10 + $0x1a8] sm:$0xff] %v1391
    %1642 = vst [vmem:[#allocation10 + $0x1c0] sm:$0xff] %v1396
    %1643 = vst [vmem:[#allocation10 + $0x1d8] sm:$0xff] %v1401
    %1644 = vst [vmem:[#allocation10 + $0x1f0] sm:$0xff] %v1406
    %1645 = vst [vmem:[#allocation10 + $0x208] sm:$0xff] %v1411
    %1646 = vst [vmem:[#allocation10 + $0x220] sm:$0xff] %v1416
    %1647 = vst [vmem:[#allocation10 + $0x238] sm:$0xff] %v1421
    %1648 = vst [vmem:[#allocation10 + $0x250] sm:$0xff] %v1426
    %1649 = vst [vmem:[#allocation10 + $0x268] sm:$0xff] %v1431
    %1650 = vst [vmem:[#allocation10 + $0x280] sm:$0xff] %v1436
    %1651 = vst [vmem:[#allocation10 + $0x298] sm:$0xff] %v1441
    %1652 = vst [vmem:[#allocation10 + $0x2b0] sm:$0xff] %v1446
    %1653 = vst [vmem:[#allocation10 + $0x2c8] sm:$0xff] %v1451
    %1654 = vst [vmem:[#allocation10 + $0x2e0] sm:$0xff] %v1456
    %1655 = vst [vmem:[#allocation10 + $0x2f8] sm:$0xff] %v1461
    %1656 = vst [vmem:[#allocation10 + $0x310] sm:$0xff] %v1466
    %1657 = vst [vmem:[#allocation10 + $0x328] sm:$0xff] %v1471
    %1658 = vst [vmem:[#allocation10 + $0x340] sm:$0xff] %v1476
    %1659 = vst [vmem:[#allocation10 + $0x358] sm:$0xff] %v1481
    %1660 = vst [vmem:[#allocation10 + $0x370] sm:$0xff] %v1486
    %1661 = vst [vmem:[#allocation10 + $0x388] sm:$0xff] %v1491
    %1662 = vst [vmem:[#allocation10 + $0x3a0] sm:$0xff] %v1496
    %1663 = vst [vmem:[#allocation10 + $0x3b8] sm:$0xff] %v1501
    %1664 = vst [vmem:[#allocation10 + $0x3d0] sm:$0xff] %v1506
    %1665 = vst [vmem:[#allocation10 + $0x3e8] sm:$0xff] %v1511
    %1666 = vst [vmem:[#allocation10 + $0x400] sm:$0xff] %v1516
    %1667 = vst [vmem:[#allocation10 + $0x418] sm:$0xff] %v1521
    %1668 = vst [vmem:[#allocation10 + $0x430] sm:$0xff] %v1526
    %1669 = vst [vmem:[#allocation10 + $0x448] sm:$0xff] %v1531
    %1670 = vst [vmem:[#allocation10 + $0x460] sm:$0xff] %v1536
    %1671 = vst [vmem:[#allocation10 + $0x478] sm:$0xff] %v1541
    %1672 = vst [vmem:[#allocation10 + $0x490] sm:$0xff] %v1546
    %1673 = vst [vmem:[#allocation10 + $0x4a8] sm:$0xff] %v1551
    %1674 = vst [vmem:[#allocation10 + $0x4c0] sm:$0xff] %v1556
    %1675 = vst [vmem:[#allocation10 + $0x4d8] sm:$0xff] %v1561
    %1676 = vst [vmem:[#allocation10 + $0x4f0] sm:$0xff] %v1566
    %1677 = vst [vmem:[#allocation10 + $0x508] sm:$0xff] %v1571
    %1678 = vst [vmem:[#allocation10 + $0x520] sm:$0xff] %v1576
    %1679 = vst [vmem:[#allocation10 + $0x538] sm:$0xff] %v1581
    %1680 = vst [vmem:[#allocation10 + $0x550] sm:$0xff] %v1586
    %1681 = vst [vmem:[#allocation10 + $0x568] sm:$0xff] %v1591
    %1682 = vst [vmem:[#allocation10 + $0x580] sm:$0xff] %v1596
    %1683 = vst [vmem:[#allocation10 + $0x598] sm:$0xff] %v1601
    %1684 = vst [vmem:[#allocation10 + $0x5b0] sm:$0xff] %v1606
    %1685 = vst [vmem:[#allocation10 + $0x5c8] sm:$0xff] %v1611
    %1686 = vst [vmem:[#allocation10 + $0x5e0] sm:$0xff] %v1616
    %1687 = vst [vmem:[#allocation10 + $0x5f8] sm:$0xff] %v1621
    // Predicated region
    $region38: #{tpu_custom_call.1} parent=1 // pred_check
      _
    $region39: #{tpu_custom_call.1} parent=1 // pred_check_branch
      %1689 = sbr.rel (0) target = $region41
    $region40: #{tpu_custom_call.1} parent=1 // pred_region
      %s1691 = ssub.s32 24576, 24576
      %1692 = vsyncadd [#allocation4], %s1691
      %s1693 = sshll.u32 [#allocation10], 4
      %s1694 = int_to_ptr.vmem [resolvable:$true] %s1693
      %1699 = dma.vmem_to_hbm [thread:$0]  %s1694, 24576, %s5, [#allocation4], 384, 384, 24
    $region41: #{tpu_custom_call.1} parent=1 // pred_fallthru
      _
    // Predicated region
    $region42: #{tpu_custom_call.1} parent=1 // pred_check
      _
    $region43: #{tpu_custom_call.1} parent=1 // pred_check_branch
      %1701 = sbr.rel (0) target = $region45
    $region44: #{tpu_custom_call.1} parent=1 // pred_region
      %1702 = dma.done [#allocation4], 24576
    $region45: #{tpu_custom_call.1} parent=1 // pred_fallthru
      _
    %1703 = vsyncpa [#allocation3], 1
    %1704 = vsyncpa [#allocation6], 1
    %1705 = vsyncpa [#allocation9], 1
    %1706 = vsyncpa [#allocation4], 1

</llo_original>
